<compile_context>
chip_gen: v6e
topology: v6e:2x2x1
jax: 0.10.0
libtpu: 0.0.40
codegen_flags: <defaults>
</compile_context>

<pallas_src>
import functools

import jax
import jax.numpy as jnp
from jax import lax
from jax.experimental import pallas as pl
from jax.experimental.pallas import tpu as pltpu


def _residual_block_kernel(x_ref, valid_ref, w1_ref, b1_ref, w2_ref, b2_ref,
                           o_ref, xext_ref, taps_ref, *, k, W, nb):
    """One grid step = `nb` images, channels-first, H*W on the lane axis.

    x_ref    : (nb, C, HW)     f32   input images (taps + residual path)
    valid_ref: (k*k, HW)       f32   0/1 validity mask per tap position
    w1_ref   : (width, K_pad)  bf16  conv1 weights (scale folded, cols zero-padded)
    b1_ref   : (width, HW)     f32   conv1 positional bias (edge-bias folded in)
    w2_ref   : (C, width)      bf16  conv2 weights (scale folded in)
    b2_ref   : (C, 1)          f32   conv2 bias (broadcast in-kernel)
    o_ref    : (nb, C, HW)     f32   output
    xext_ref : (C, HW + 2*S)   f32   scratch: one image staged with zero apron
    taps_ref : (K_pad, nb*HW)  bf16  scratch: batched im2col slab
    """
    C = x_ref.shape[1]
    HW = x_ref.shape[2]
    pad = k // 2
    S = pad * W + pad                       # max |flat shift| of any tap
    kk = k * k
    K_pad = taps_ref.shape[0]
    pad_rows = K_pad - kk * C

    valid = valid_ref[...]

    # Zero the left/right aprons of the staging buffer.  Kept once-per-grid-step
    # (NOT gated on pl.program_id(0) == 0): with "parallel" semantics each
    # TensorCore owns its own scratch and only one core sees id 0, and stale
    # VMEM in the apron can hold NaN/Inf which the 0/1 validity multiply cannot
    # neutralise (0*NaN = NaN).  Cost: two tiny masked stores per step.
    if S > 0:
        zeros = jnp.zeros((C, S), jnp.float32)
        xext_ref[:, pl.ds(0, S)] = zeros
        xext_ref[:, pl.ds(S + HW, S)] = zeros

    zpad = jnp.zeros((pad_rows, HW), jnp.float32) if pad_rows else None

    # Build the batched im2col slab: per image, k*k statically-offset window
    # reads of the apron-staged image (row-wrap positions masked to 0) are
    # concatenated to (K_pad, HW) and written with ONE aligned bf16 store at
    # lane offset i*HW (multiple of 128; K_pad is a multiple of 16).
    # TODO(synk): per-dy window load + lane-roll for dx=+-1 (XLU) would trim the
    # unaligned vld count further; micro-win, left out for robustness.
    for i in range(nb):
        xext_ref[:, pl.ds(S, HW)] = x_ref[i]            # stage inside the apron
        taps = []
        t = 0
        for dy in range(-pad, pad + 1):
            for dx in range(-pad, pad + 1):
                off = S + dy * W + dx                   # static, in [0, 2S]
                window = xext_ref[:, pl.ds(off, HW)]    # (C, HW)
                if dy == 0 and dx == 0:
                    taps.append(window)                 # center tap: all valid
                else:
                    taps.append(window * valid[t:t + 1, :])
                t += 1
        if pad_rows:
            taps.append(zpad)
        slab_i = jnp.concatenate(taps, axis=0).astype(jnp.bfloat16)
        taps_ref[:, pl.ds(i * HW, HW)] = slab_i         # (K_pad, HW) aligned

    # conv1: ONE fused K=K_pad, N=nb*HW MXU matmul for the whole grid step.
    h = jnp.dot(w1_ref[...], taps_ref[...],
                preferred_element_type=jnp.float32)     # (width, nb*HW) f32

    # bias (actnorm shift + folded edge-bias positional term) + ReLU, applied
    # per image lane-chunk (no (width, nb*HW) tiled-bias materialisation),
    # cast to bf16 to feed conv2.
    b1 = b1_ref[...]
    hact = jnp.concatenate(
        [jnp.maximum(h[:, i * HW:(i + 1) * HW] + b1, 0.0).astype(jnp.bfloat16)
         for i in range(nb)], axis=1)                   # (width, nb*HW) bf16

    # conv2 (1x1): ONE batched matmul, no nonlinearity.
    y = jnp.dot(w2_ref[...], hact,
                preferred_element_type=jnp.float32)     # (C, nb*HW) f32

    # residual add + final ReLU, all f32, lane-dense stores.
    b2 = b2_ref[...]                                    # (C, 1) broadcasts free
    for i in range(nb):
        o_ref[i] = jnp.maximum(x_ref[i] + y[:, i * HW:(i + 1) * HW] + b2, 0.0)


def _tap_validity(k, H, W):
    """(k*k, H*W) 0/1 mask: 1 where tap (dy, dx) lands inside the image."""
    pad = k // 2
    hh = jnp.arange(H)
    ww = jnp.arange(W)
    rows = []
    for dy in range(-pad, pad + 1):
        for dx in range(-pad, pad + 1):
            vh = (hh + dy >= 0) & (hh + dy < H)
            vw = (ww + dx >= 0) & (ww + dx < W)
            rows.append((vh[:, None] & vw[None, :]).reshape(H * W))
    return jnp.stack(rows, axis=0).astype(jnp.float32)


def _pick_nb(B, nb):
    """Clamp nb: must divide B and keep >= 2 grid steps (v7x has 2 TCs)."""
    nb = max(1, min(nb, B))
    if B >= 2:
        nb = min(nb, max(1, B // 2))
    while B % nb:
        nb -= 1
    return nb


def residual_block(x_nchw, params, *, k, edge_bias=True, nb=4,
                   vmem_limit_bytes=None):
    """x_nchw: (B, C, H, W) float32.  Returns (B, C, H, W).

    nb = images per grid step (tuning knob).  Guidance:
      * size it so each step moves ~0.5-2 MiB of HBM (x+out = 2*C*H*W*4*nb B),
      * keep B//nb >= 2 so the "parallel" axis can shard across v7x's 2 TCs,
      * keep the per-step VMEM estimate below ~48 MiB (v7x: 64 MiB physical)
        and below the default scoped limit (16 MiB on v5e) unless
        vmem_limit_bytes is raised.
    """
    w1, s1, b1, w2, s2, b2 = params
    B, C, H, W = x_nchw.shape
    HW = H * W
    width = w1.shape[-1]
    use_mask = bool(edge_bias and k > 1)
    assert k % 2 == 1, "only odd kernel sizes supported (symmetric zero pad)"
    assert w1.shape[1] == C + (1 if use_mask else 0)

    nb = _pick_nb(B, nb)
    kkC = k * k * C
    K_pad = ((kkC + 15) // 16) * 16          # bf16 sublane tile = 16 rows
    pad_col = K_pad - kkC

    # ---------- parameter folding (pure glue, done once, tiny arrays) ----------
    valid = _tap_validity(k, H, W)                                  # (k*k, HW)
    # Fold actnorm scale s1 into conv1 weights; pack to (width, k*k*C) matching
    # the in-kernel tap order (dy-major, dx, then channel); zero-pad to K_pad.
    w1_img = w1[:, :C, :] * s1[0][None, None, :]                    # (k*k, C, width)
    w1_img = jnp.transpose(w1_img, (2, 0, 1)).reshape(width, kkC)
    w1_img = jnp.pad(w1_img, ((0, 0), (0, pad_col))).astype(jnp.bfloat16)
    # Edge-bias mask channel is a pure function of position: fold it (and b1)
    # into a positional bias so the kernel never materialises the mask channel.
    b1_pos = jnp.broadcast_to(b1[0][:, None], (width, HW)).astype(jnp.float32)
    if use_mask:
        w1_mask = w1[:, C, :] * s1[0][None, :]                      # (k*k, width)
        b1_pos = b1_pos + jnp.einsum("tw,tp->wp", w1_mask, 1.0 - valid,
                                     precision=lax.Precision.HIGHEST)
    # Fold s2 into conv2 weights, transpose to channels-first; bias as (C, 1).
    w2_eff = (w2 * s2[0][None, :]).T.astype(jnp.bfloat16)           # (C, width)
    b2_col = b2[0][:, None].astype(jnp.float32)                     # (C, 1)

    # channels-first flattening: NCHW is already (B, C, H*W) -- no transpose.
    x_flat = x_nchw.reshape(B, C, HW).astype(jnp.float32)

    pad = k // 2
    S = pad * W + pad

    # Rough per-step VMEM budget: double-buffered x/out, bf16 taps slab, matmul
    # intermediates (may spill to VMEM), grid-invariant operands, staging buf.
    est_vmem = (4 * nb * C * HW * 4                              # x + out, 2x buffered
                + K_pad * nb * HW * 2                            # bf16 taps slab
                + nb * HW * (width * 4 + width * 2 + C * 4)      # h, hact, y
                + (k * k + width) * HW * 4 + C * 4               # valid, b1_pos, b2
                + (width * K_pad + C * width) * 2                # w1, w2
                + C * (HW + 2 * S) * 4)                          # xext staging
    assert est_vmem < 48 * 2**20, (
        f"nb={nb} needs ~{est_vmem / 2**20:.1f} MiB VMEM per grid step; lower "
        "nb (v7x has only 64 MiB physical VMEM -- keep <~48 MiB with headroom)")

    kernel = functools.partial(_residual_block_kernel, k=k, W=W, nb=nb)

    out = pl.pallas_call(
        kernel,
        out_shape=jax.ShapeDtypeStruct((B, C, HW), jnp.float32),
        grid_spec=pltpu.PrefetchScalarGridSpec(
            num_scalar_prefetch=0,
            grid=(B // nb,),
            in_specs=[
                pl.BlockSpec((nb, C, HW), lambda b: (b, 0, 0)),
                pl.BlockSpec((k * k, HW), lambda b: (0, 0)),
                pl.BlockSpec((width, K_pad), lambda b: (0, 0)),
                pl.BlockSpec((width, HW), lambda b: (0, 0)),
                pl.BlockSpec((C, width), lambda b: (0, 0)),
                pl.BlockSpec((C, 1), lambda b: (0, 0)),
            ],
            out_specs=pl.BlockSpec((nb, C, HW), lambda b: (b, 0, 0)),
            scratch_shapes=[
                pltpu.VMEM((C, HW + 2 * S), jnp.float32),
                pltpu.VMEM((K_pad, nb * HW), jnp.bfloat16),
            ],
        ),
        compiler_params=pltpu.CompilerParams(
            dimension_semantics=("parallel",),
            vmem_limit_bytes=vmem_limit_bytes),
    )(x_flat, valid, w1_img, b1_pos, w2_eff, b2_col)

    return out.reshape(B, C, H, W)


def init_params(key, k, c, width, edge_bias):
    # Deterministic synthetic init (Glow convs: N(0, 0.05) weights).
    # TODO(synk): actnorm's data-dependent init is not reproduced; scale starts at 1.
    cin1 = c + (1 if (edge_bias and k > 1) else 0)
    k1, k2, k3, k4 = jax.random.split(key, 4)
    w1 = jax.random.normal(k1, (k * k, cin1, width), jnp.float32) * 0.05
    s1 = jnp.ones((1, width), jnp.float32)
    b1 = jax.random.normal(k2, (1, width), jnp.float32) * 0.05
    w2 = jax.random.normal(k3, (width, c), jnp.float32) * 0.05
    s2 = jnp.ones((1, c), jnp.float32)
    b2 = jax.random.normal(k4, (1, c), jnp.float32) * 0.05
    return (w1, s1, b1, w2, s2, b2)


def residual_block_ref(x_nchw, params, *, k, edge_bias=True):
    # Pure-JAX high-precision reference for validation.
    w1, s1, b1, w2, s2, b2 = params
    B, C, H, W = x_nchw.shape
    x = jnp.transpose(x_nchw, (0, 2, 3, 1)).astype(jnp.float32)
    pad = k // 2
    xp = jnp.pad(x, ((0, 0), (pad, pad), (pad, pad), (0, 0)))
    if edge_bias and k > 1:
        mask = jnp.pad(jnp.zeros((B, H, W, 1), jnp.float32),
                       ((0, 0), (pad, pad), (pad, pad), (0, 0)),
                       constant_values=1.0)
        xp = jnp.concatenate([xp, mask], axis=-1)
    cin1 = xp.shape[-1]
    w1_hwio = w1.reshape(k, k, cin1, -1)
    c1 = lax.conv_general_dilated(xp, w1_hwio, (1, 1), 'VALID',
                                  dimension_numbers=('NHWC', 'HWIO', 'NHWC'),
                                  precision=lax.Precision.HIGHEST)
    h = jax.nn.relu(c1 * s1 + b1)
    c2 = jnp.einsum('bhwd,dc->bhwc', h, w2, precision=lax.Precision.HIGHEST)
    y = jax.nn.relu(x + c2 * s2 + b2)
    return jnp.transpose(y, (0, 3, 1, 2))


if __name__ == "__main__":
    key = jax.random.PRNGKey(0)
    kx, kp = jax.random.split(key)

    B, C, H, W = 8, 8, 16, 16      # small NCHW input
    k, width, edge_bias = 3, 32, True

    x = jax.random.normal(kx, (B, C, H, W), jnp.float32)
    params = init_params(kp, k, C, width, edge_bias)
    ref = residual_block_ref(x, params, k=k, edge_bias=edge_bias)

    # Batched path: nb=4 images per grid step, grid = B//nb = 2 (both v7x TCs).
    out = residual_block(x, params, k=k, edge_bias=edge_bias, nb=4)
    out = jax.block_until_ready(out)
    assert out.shape == x.shape
    # bf16 MXU operands vs f32-HIGHEST reference: bias/residual/relu stay f32,
    # so the gap stays well inside this tolerance at K = 80 / 32.
    assert jnp.allclose(out, ref, atol=2e-2, rtol=2e-2), "mismatch (nb=4)"

    # nb=1 path cross-check (small batch, grid = 2).
    out1 = jax.block_until_ready(
        residual_block(x[:2], params, k=k, edge_bias=edge_bias, nb=1))
    assert jnp.allclose(out1, ref[:2], atol=2e-2, rtol=2e-2), "mismatch (nb=1)"

    print("KERNEL_OK")
</pallas_src>

<mosaic_0001>
module attributes {stable_mosaic.version = 11 : i64} {
  func.func @_residual_block_kernel(%arg0: i32, %arg1: memref<4x8x256xf32, #tpu.memory_space<vmem>>, %arg2: memref<9x256xf32, #tpu.memory_space<vmem>>, %arg3: memref<32x80xbf16, #tpu.memory_space<vmem>>, %arg4: memref<32x256xf32, #tpu.memory_space<vmem>>, %arg5: memref<8x32xbf16, #tpu.memory_space<vmem>>, %arg6: memref<8x1xf32, #tpu.memory_space<vmem>>, %arg7: memref<4x8x256xf32, #tpu.memory_space<vmem>>, %arg8: memref<8x290xf32, #tpu.memory_space<vmem>>, %arg9: memref<80x1024xbf16, #tpu.memory_space<vmem>>) attributes {dimension_semantics = [#tpu.dimension_semantics<parallel>], iteration_bounds = array<i64: 2>, scalar_prefetch = 0 : i64, scratch_operands = 2 : i64, tpu.core_type = #tpu.core_type<tc>, window_params = [{transform_indices = @transform_0, window_bounds = array<i64: 4, 8, 256>}, {pipeline_mode = #tpu.pipeline_mode<synchronous>, transform_indices = @transform_1, window_bounds = array<i64: 9, 256>}, {pipeline_mode = #tpu.pipeline_mode<synchronous>, transform_indices = @transform_2, window_bounds = array<i64: 32, 80>}, {pipeline_mode = #tpu.pipeline_mode<synchronous>, transform_indices = @transform_3, window_bounds = array<i64: 32, 256>}, {pipeline_mode = #tpu.pipeline_mode<synchronous>, transform_indices = @transform_4, window_bounds = array<i64: 8, 32>}, {pipeline_mode = #tpu.pipeline_mode<synchronous>, transform_indices = @transform_5, window_bounds = array<i64: 8, 1>}, {transform_indices = @transform_6, window_bounds = array<i64: 4, 8, 256>}]} {
    %c0 = arith.constant 0 : index
    %c0_0 = arith.constant 0 : index
    %0 = vector.load %arg2[%c0, %c0_0] : memref<9x256xf32, #tpu.memory_space<vmem>>, vector<9x256xf32>
    %cst = arith.constant 0.000000e+00 : f32
    %1 = vector.broadcast %cst : f32 to vector<8x17xf32>
    %c0_1 = arith.constant 0 : index
    %c0_2 = arith.constant 0 : index
    %2 = vector.load %arg8[%c0_1, %c0_2] : memref<8x290xf32, #tpu.memory_space<vmem>>, vector<8x17xf32>
    tpu.vector_store %arg8[%c0_1, %c0_2], %1 {strides = array<i32>} : memref<8x290xf32, #tpu.memory_space<vmem>>, vector<8x17xf32>,
    %c0_3 = arith.constant 0 : index
    %c273 = arith.constant 273 : index
    %3 = vector.load %arg8[%c0_3, %c273] : memref<8x290xf32, #tpu.memory_space<vmem>>, vector<8x17xf32>
    tpu.vector_store %arg8[%c0_3, %c273], %1 {strides = array<i32>} : memref<8x290xf32, #tpu.memory_space<vmem>>, vector<8x17xf32>,
    %cst_4 = arith.constant 0.000000e+00 : f32
    %4 = vector.broadcast %cst_4 : f32 to vector<8x256xf32>
    %c0_5 = arith.constant 0 : index
    %c0_6 = arith.constant 0 : index
    %c0_7 = arith.constant 0 : index
    %5 = vector.load %arg1[%c0_5, %c0_6, %c0_7] : memref<4x8x256xf32, #tpu.memory_space<vmem>>, vector<1x8x256xf32>
    %6 = vector.shape_cast %5 : vector<1x8x256xf32> to vector<8x256xf32>
    %c0_8 = arith.constant 0 : index
    %c17 = arith.constant 17 : index
    %7 = vector.load %arg8[%c0_8, %c17] : memref<8x290xf32, #tpu.memory_space<vmem>>, vector<8x256xf32>
    tpu.vector_store %arg8[%c0_8, %c17], %6 {strides = array<i32>} : memref<8x290xf32, #tpu.memory_space<vmem>>, vector<8x256xf32>,
    %c0_9 = arith.constant 0 : index
    %c0_10 = arith.constant 0 : index
    %8 = vector.load %arg8[%c0_9, %c0_10] : memref<8x290xf32, #tpu.memory_space<vmem>>, vector<8x256xf32>
    %9 = vector.extract_strided_slice %0 {offsets = [0, 0], sizes = [1, 256], strides = [1, 1]} : vector<9x256xf32> to vector<1x256xf32>
    %10 = vector.broadcast %9 : vector<1x256xf32> to vector<8x256xf32>
    %11 = arith.mulf %8, %10 : vector<8x256xf32>
    %c0_11 = arith.constant 0 : index
    %c1 = arith.constant 1 : index
    %12 = vector.load %arg8[%c0_11, %c1] : memref<8x290xf32, #tpu.memory_space<vmem>>, vector<8x256xf32>
    %13 = vector.extract_strided_slice %0 {offsets = [1, 0], sizes = [1, 256], strides = [1, 1]} : vector<9x256xf32> to vector<1x256xf32>
    %14 = vector.broadcast %13 : vector<1x256xf32> to vector<8x256xf32>
    %15 = arith.mulf %12, %14 : vector<8x256xf32>
    %c0_12 = arith.constant 0 : index
    %c2 = arith.constant 2 : index
    %16 = vector.load %arg8[%c0_12, %c2] : memref<8x290xf32, #tpu.memory_space<vmem>>, vector<8x256xf32>
    %17 = vector.extract_strided_slice %0 {offsets = [2, 0], sizes = [1, 256], strides = [1, 1]} : vector<9x256xf32> to vector<1x256xf32>
    %18 = vector.broadcast %17 : vector<1x256xf32> to vector<8x256xf32>
    %19 = arith.mulf %16, %18 : vector<8x256xf32>
    %c0_13 = arith.constant 0 : index
    %c16 = arith.constant 16 : index
    %20 = vector.load %arg8[%c0_13, %c16] : memref<8x290xf32, #tpu.memory_space<vmem>>, vector<8x256xf32>
    %21 = vector.extract_strided_slice %0 {offsets = [3, 0], sizes = [1, 256], strides = [1, 1]} : vector<9x256xf32> to vector<1x256xf32>
    %22 = vector.broadcast %21 : vector<1x256xf32> to vector<8x256xf32>
    %23 = arith.mulf %20, %22 : vector<8x256xf32>
    %c0_14 = arith.constant 0 : index
    %c17_15 = arith.constant 17 : index
    %24 = vector.load %arg8[%c0_14, %c17_15] : memref<8x290xf32, #tpu.memory_space<vmem>>, vector<8x256xf32>
    %c0_16 = arith.constant 0 : index
    %c18 = arith.constant 18 : index
    %25 = vector.load %arg8[%c0_16, %c18] : memref<8x290xf32, #tpu.memory_space<vmem>>, vector<8x256xf32>
    %26 = vector.extract_strided_slice %0 {offsets = [5, 0], sizes = [1, 256], strides = [1, 1]} : vector<9x256xf32> to vector<1x256xf32>
    %27 = vector.broadcast %26 : vector<1x256xf32> to vector<8x256xf32>
    %28 = arith.mulf %25, %27 : vector<8x256xf32>
    %c0_17 = arith.constant 0 : index
    %c32 = arith.constant 32 : index
    %29 = vector.load %arg8[%c0_17, %c32] : memref<8x290xf32, #tpu.memory_space<vmem>>, vector<8x256xf32>
    %30 = vector.extract_strided_slice %0 {offsets = [6, 0], sizes = [1, 256], strides = [1, 1]} : vector<9x256xf32> to vector<1x256xf32>
    %31 = vector.broadcast %30 : vector<1x256xf32> to vector<8x256xf32>
    %32 = arith.mulf %29, %31 : vector<8x256xf32>
    %c0_18 = arith.constant 0 : index
    %c33 = arith.constant 33 : index
    %33 = vector.load %arg8[%c0_18, %c33] : memref<8x290xf32, #tpu.memory_space<vmem>>, vector<8x256xf32>
    %34 = vector.extract_strided_slice %0 {offsets = [7, 0], sizes = [1, 256], strides = [1, 1]} : vector<9x256xf32> to vector<1x256xf32>
    %35 = vector.broadcast %34 : vector<1x256xf32> to vector<8x256xf32>
    %36 = arith.mulf %33, %35 : vector<8x256xf32>
    %c0_19 = arith.constant 0 : index
    %c34 = arith.constant 34 : index
    %37 = vector.load %arg8[%c0_19, %c34] : memref<8x290xf32, #tpu.memory_space<vmem>>, vector<8x256xf32>
    %38 = vector.extract_strided_slice %0 {offsets = [8, 0], sizes = [1, 256], strides = [1, 1]} : vector<9x256xf32> to vector<1x256xf32>
    %39 = vector.broadcast %38 : vector<1x256xf32> to vector<8x256xf32>
    %40 = arith.mulf %37, %39 : vector<8x256xf32>
    %41 = tpu.concatenate %11, %15, %19, %23, %24, %28, %32, %36, %40, %4 in 0 : vector<8x256xf32>, vector<8x256xf32>, vector<8x256xf32>, vector<8x256xf32>, vector<8x256xf32>, vector<8x256xf32>, vector<8x256xf32>, vector<8x256xf32>, vector<8x256xf32>, vector<8x256xf32> -> vector<80x256xf32>
    %42 = arith.truncf %41 : vector<80x256xf32> to vector<80x256xbf16>
    %c0_20 = arith.constant 0 : index
    %c0_21 = arith.constant 0 : index
    %43 = vector.load %arg9[%c0_20, %c0_21] : memref<80x1024xbf16, #tpu.memory_space<vmem>>, vector<80x256xbf16>
    tpu.vector_store %arg9[%c0_20, %c0_21], %42 {strides = array<i32>} : memref<80x1024xbf16, #tpu.memory_space<vmem>>, vector<80x256xbf16>,
    %c1_22 = arith.constant 1 : index
    %c0_23 = arith.constant 0 : index
    %c0_24 = arith.constant 0 : index
    %44 = vector.load %arg1[%c1_22, %c0_23, %c0_24] : memref<4x8x256xf32, #tpu.memory_space<vmem>>, vector<1x8x256xf32>
    %45 = vector.shape_cast %44 : vector<1x8x256xf32> to vector<8x256xf32>
    %c0_25 = arith.constant 0 : index
    %c17_26 = arith.constant 17 : index
    %46 = vector.load %arg8[%c0_25, %c17_26] : memref<8x290xf32, #tpu.memory_space<vmem>>, vector<8x256xf32>
    tpu.vector_store %arg8[%c0_25, %c17_26], %45 {strides = array<i32>} : memref<8x290xf32, #tpu.memory_space<vmem>>, vector<8x256xf32>,
    %c0_27 = arith.constant 0 : index
    %c0_28 = arith.constant 0 : index
    %47 = vector.load %arg8[%c0_27, %c0_28] : memref<8x290xf32, #tpu.memory_space<vmem>>, vector<8x256xf32>
    %48 = vector.extract_strided_slice %0 {offsets = [0, 0], sizes = [1, 256], strides = [1, 1]} : vector<9x256xf32> to vector<1x256xf32>
    %49 = vector.broadcast %48 : vector<1x256xf32> to vector<8x256xf32>
    %50 = arith.mulf %47, %49 : vector<8x256xf32>
    %c0_29 = arith.constant 0 : index
    %c1_30 = arith.constant 1 : index
    %51 = vector.load %arg8[%c0_29, %c1_30] : memref<8x290xf32, #tpu.memory_space<vmem>>, vector<8x256xf32>
    %52 = vector.extract_strided_slice %0 {offsets = [1, 0], sizes = [1, 256], strides = [1, 1]} : vector<9x256xf32> to vector<1x256xf32>
    %53 = vector.broadcast %52 : vector<1x256xf32> to vector<8x256xf32>
    %54 = arith.mulf %51, %53 : vector<8x256xf32>
    %c0_31 = arith.constant 0 : index
    %c2_32 = arith.constant 2 : index
    %55 = vector.load %arg8[%c0_31, %c2_32] : memref<8x290xf32, #tpu.memory_space<vmem>>, vector<8x256xf32>
    %56 = vector.extract_strided_slice %0 {offsets = [2, 0], sizes = [1, 256], strides = [1, 1]} : vector<9x256xf32> to vector<1x256xf32>
    %57 = vector.broadcast %56 : vector<1x256xf32> to vector<8x256xf32>
    %58 = arith.mulf %55, %57 : vector<8x256xf32>
    %c0_33 = arith.constant 0 : index
    %c16_34 = arith.constant 16 : index
    %59 = vector.load %arg8[%c0_33, %c16_34] : memref<8x290xf32, #tpu.memory_space<vmem>>, vector<8x256xf32>
    %60 = vector.extract_strided_slice %0 {offsets = [3, 0], sizes = [1, 256], strides = [1, 1]} : vector<9x256xf32> to vector<1x256xf32>
    %61 = vector.broadcast %60 : vector<1x256xf32> to vector<8x256xf32>
    %62 = arith.mulf %59, %61 : vector<8x256xf32>
    %c0_35 = arith.constant 0 : index
    %c17_36 = arith.constant 17 : index
    %63 = vector.load %arg8[%c0_35, %c17_36] : memref<8x290xf32, #tpu.memory_space<vmem>>, vector<8x256xf32>
    %c0_37 = arith.constant 0 : index
    %c18_38 = arith.constant 18 : index
    %64 = vector.load %arg8[%c0_37, %c18_38] : memref<8x290xf32, #tpu.memory_space<vmem>>, vector<8x256xf32>
    %65 = vector.extract_strided_slice %0 {offsets = [5, 0], sizes = [1, 256], strides = [1, 1]} : vector<9x256xf32> to vector<1x256xf32>
    %66 = vector.broadcast %65 : vector<1x256xf32> to vector<8x256xf32>
    %67 = arith.mulf %64, %66 : vector<8x256xf32>
    %c0_39 = arith.constant 0 : index
    %c32_40 = arith.constant 32 : index
    %68 = vector.load %arg8[%c0_39, %c32_40] : memref<8x290xf32, #tpu.memory_space<vmem>>, vector<8x256xf32>
    %69 = vector.extract_strided_slice %0 {offsets = [6, 0], sizes = [1, 256], strides = [1, 1]} : vector<9x256xf32> to vector<1x256xf32>
    %70 = vector.broadcast %69 : vector<1x256xf32> to vector<8x256xf32>
    %71 = arith.mulf %68, %70 : vector<8x256xf32>
    %c0_41 = arith.constant 0 : index
    %c33_42 = arith.constant 33 : index
    %72 = vector.load %arg8[%c0_41, %c33_42] : memref<8x290xf32, #tpu.memory_space<vmem>>, vector<8x256xf32>
    %73 = vector.extract_strided_slice %0 {offsets = [7, 0], sizes = [1, 256], strides = [1, 1]} : vector<9x256xf32> to vector<1x256xf32>
    %74 = vector.broadcast %73 : vector<1x256xf32> to vector<8x256xf32>
    %75 = arith.mulf %72, %74 : vector<8x256xf32>
    %c0_43 = arith.constant 0 : index
    %c34_44 = arith.constant 34 : index
    %76 = vector.load %arg8[%c0_43, %c34_44] : memref<8x290xf32, #tpu.memory_space<vmem>>, vector<8x256xf32>
    %77 = vector.extract_strided_slice %0 {offsets = [8, 0], sizes = [1, 256], strides = [1, 1]} : vector<9x256xf32> to vector<1x256xf32>
    %78 = vector.broadcast %77 : vector<1x256xf32> to vector<8x256xf32>
    %79 = arith.mulf %76, %78 : vector<8x256xf32>
    %80 = tpu.concatenate %50, %54, %58, %62, %63, %67, %71, %75, %79, %4 in 0 : vector<8x256xf32>, vector<8x256xf32>, vector<8x256xf32>, vector<8x256xf32>, vector<8x256xf32>, vector<8x256xf32>, vector<8x256xf32>, vector<8x256xf32>, vector<8x256xf32>, vector<8x256xf32> -> vector<80x256xf32>
    %81 = arith.truncf %80 : vector<80x256xf32> to vector<80x256xbf16>
    %c0_45 = arith.constant 0 : index
    %c256 = arith.constant 256 : index
    %82 = vector.load %arg9[%c0_45, %c256] : memref<80x1024xbf16, #tpu.memory_space<vmem>>, vector<80x256xbf16>
    tpu.vector_store %arg9[%c0_45, %c256], %81 {strides = array<i32>} : memref<80x1024xbf16, #tpu.memory_space<vmem>>, vector<80x256xbf16>,
    %c2_46 = arith.constant 2 : index
    %c0_47 = arith.constant 0 : index
    %c0_48 = arith.constant 0 : index
    %83 = vector.load %arg1[%c2_46, %c0_47, %c0_48] : memref<4x8x256xf32, #tpu.memory_space<vmem>>, vector<1x8x256xf32>
    %84 = vector.shape_cast %83 : vector<1x8x256xf32> to vector<8x256xf32>
    %c0_49 = arith.constant 0 : index
    %c17_50 = arith.constant 17 : index
    %85 = vector.load %arg8[%c0_49, %c17_50] : memref<8x290xf32, #tpu.memory_space<vmem>>, vector<8x256xf32>
    tpu.vector_store %arg8[%c0_49, %c17_50], %84 {strides = array<i32>} : memref<8x290xf32, #tpu.memory_space<vmem>>, vector<8x256xf32>,
    %c0_51 = arith.constant 0 : index
    %c0_52 = arith.constant 0 : index
    %86 = vector.load %arg8[%c0_51, %c0_52] : memref<8x290xf32, #tpu.memory_space<vmem>>, vector<8x256xf32>
    %87 = vector.extract_strided_slice %0 {offsets = [0, 0], sizes = [1, 256], strides = [1, 1]} : vector<9x256xf32> to vector<1x256xf32>
    %88 = vector.broadcast %87 : vector<1x256xf32> to vector<8x256xf32>
    %89 = arith.mulf %86, %88 : vector<8x256xf32>
    %c0_53 = arith.constant 0 : index
    %c1_54 = arith.constant 1 : index
    %90 = vector.load %arg8[%c0_53, %c1_54] : memref<8x290xf32, #tpu.memory_space<vmem>>, vector<8x256xf32>
    %91 = vector.extract_strided_slice %0 {offsets = [1, 0], sizes = [1, 256], strides = [1, 1]} : vector<9x256xf32> to vector<1x256xf32>
    %92 = vector.broadcast %91 : vector<1x256xf32> to vector<8x256xf32>
    %93 = arith.mulf %90, %92 : vector<8x256xf32>
    %c0_55 = arith.constant 0 : index
    %c2_56 = arith.constant 2 : index
    %94 = vector.load %arg8[%c0_55, %c2_56] : memref<8x290xf32, #tpu.memory_space<vmem>>, vector<8x256xf32>
    %95 = vector.extract_strided_slice %0 {offsets = [2, 0], sizes = [1, 256], strides = [1, 1]} : vector<9x256xf32> to vector<1x256xf32>
    %96 = vector.broadcast %95 : vector<1x256xf32> to vector<8x256xf32>
    %97 = arith.mulf %94, %96 : vector<8x256xf32>
    %c0_57 = arith.constant 0 : index
    %c16_58 = arith.constant 16 : index
    %98 = vector.load %arg8[%c0_57, %c16_58] : memref<8x290xf32, #tpu.memory_space<vmem>>, vector<8x256xf32>
    %99 = vector.extract_strided_slice %0 {offsets = [3, 0], sizes = [1, 256], strides = [1, 1]} : vector<9x256xf32> to vector<1x256xf32>
    %100 = vector.broadcast %99 : vector<1x256xf32> to vector<8x256xf32>
    %101 = arith.mulf %98, %100 : vector<8x256xf32>
    %c0_59 = arith.constant 0 : index
    %c17_60 = arith.constant 17 : index
    %102 = vector.load %arg8[%c0_59, %c17_60] : memref<8x290xf32, #tpu.memory_space<vmem>>, vector<8x256xf32>
    %c0_61 = arith.constant 0 : index
    %c18_62 = arith.constant 18 : index
    %103 = vector.load %arg8[%c0_61, %c18_62] : memref<8x290xf32, #tpu.memory_space<vmem>>, vector<8x256xf32>
    %104 = vector.extract_strided_slice %0 {offsets = [5, 0], sizes = [1, 256], strides = [1, 1]} : vector<9x256xf32> to vector<1x256xf32>
    %105 = vector.broadcast %104 : vector<1x256xf32> to vector<8x256xf32>
    %106 = arith.mulf %103, %105 : vector<8x256xf32>
    %c0_63 = arith.constant 0 : index
    %c32_64 = arith.constant 32 : index
    %107 = vector.load %arg8[%c0_63, %c32_64] : memref<8x290xf32, #tpu.memory_space<vmem>>, vector<8x256xf32>
    %108 = vector.extract_strided_slice %0 {offsets = [6, 0], sizes = [1, 256], strides = [1, 1]} : vector<9x256xf32> to vector<1x256xf32>
    %109 = vector.broadcast %108 : vector<1x256xf32> to vector<8x256xf32>
    %110 = arith.mulf %107, %109 : vector<8x256xf32>
    %c0_65 = arith.constant 0 : index
    %c33_66 = arith.constant 33 : index
    %111 = vector.load %arg8[%c0_65, %c33_66] : memref<8x290xf32, #tpu.memory_space<vmem>>, vector<8x256xf32>
    %112 = vector.extract_strided_slice %0 {offsets = [7, 0], sizes = [1, 256], strides = [1, 1]} : vector<9x256xf32> to vector<1x256xf32>
    %113 = vector.broadcast %112 : vector<1x256xf32> to vector<8x256xf32>
    %114 = arith.mulf %111, %113 : vector<8x256xf32>
    %c0_67 = arith.constant 0 : index
    %c34_68 = arith.constant 34 : index
    %115 = vector.load %arg8[%c0_67, %c34_68] : memref<8x290xf32, #tpu.memory_space<vmem>>, vector<8x256xf32>
    %116 = vector.extract_strided_slice %0 {offsets = [8, 0], sizes = [1, 256], strides = [1, 1]} : vector<9x256xf32> to vector<1x256xf32>
    %117 = vector.broadcast %116 : vector<1x256xf32> to vector<8x256xf32>
    %118 = arith.mulf %115, %117 : vector<8x256xf32>
    %119 = tpu.concatenate %89, %93, %97, %101, %102, %106, %110, %114, %118, %4 in 0 : vector<8x256xf32>, vector<8x256xf32>, vector<8x256xf32>, vector<8x256xf32>, vector<8x256xf32>, vector<8x256xf32>, vector<8x256xf32>, vector<8x256xf32>, vector<8x256xf32>, vector<8x256xf32> -> vector<80x256xf32>
    %120 = arith.truncf %119 : vector<80x256xf32> to vector<80x256xbf16>
    %c0_69 = arith.constant 0 : index
    %c512 = arith.constant 512 : index
    %121 = vector.load %arg9[%c0_69, %c512] : memref<80x1024xbf16, #tpu.memory_space<vmem>>, vector<80x256xbf16>
    tpu.vector_store %arg9[%c0_69, %c512], %120 {strides = array<i32>} : memref<80x1024xbf16, #tpu.memory_space<vmem>>, vector<80x256xbf16>,
    %c3 = arith.constant 3 : index
    %c0_70 = arith.constant 0 : index
    %c0_71 = arith.constant 0 : index
    %122 = vector.load %arg1[%c3, %c0_70, %c0_71] : memref<4x8x256xf32, #tpu.memory_space<vmem>>, vector<1x8x256xf32>
    %123 = vector.shape_cast %122 : vector<1x8x256xf32> to vector<8x256xf32>
    %c0_72 = arith.constant 0 : index
    %c17_73 = arith.constant 17 : index
    %124 = vector.load %arg8[%c0_72, %c17_73] : memref<8x290xf32, #tpu.memory_space<vmem>>, vector<8x256xf32>
    tpu.vector_store %arg8[%c0_72, %c17_73], %123 {strides = array<i32>} : memref<8x290xf32, #tpu.memory_space<vmem>>, vector<8x256xf32>,
    %c0_74 = arith.constant 0 : index
    %c0_75 = arith.constant 0 : index
    %125 = vector.load %arg8[%c0_74, %c0_75] : memref<8x290xf32, #tpu.memory_space<vmem>>, vector<8x256xf32>
    %126 = vector.extract_strided_slice %0 {offsets = [0, 0], sizes = [1, 256], strides = [1, 1]} : vector<9x256xf32> to vector<1x256xf32>
    %127 = vector.broadcast %126 : vector<1x256xf32> to vector<8x256xf32>
    %128 = arith.mulf %125, %127 : vector<8x256xf32>
    %c0_76 = arith.constant 0 : index
    %c1_77 = arith.constant 1 : index
    %129 = vector.load %arg8[%c0_76, %c1_77] : memref<8x290xf32, #tpu.memory_space<vmem>>, vector<8x256xf32>
    %130 = vector.extract_strided_slice %0 {offsets = [1, 0], sizes = [1, 256], strides = [1, 1]} : vector<9x256xf32> to vector<1x256xf32>
    %131 = vector.broadcast %130 : vector<1x256xf32> to vector<8x256xf32>
    %132 = arith.mulf %129, %131 : vector<8x256xf32>
    %c0_78 = arith.constant 0 : index
    %c2_79 = arith.constant 2 : index
    %133 = vector.load %arg8[%c0_78, %c2_79] : memref<8x290xf32, #tpu.memory_space<vmem>>, vector<8x256xf32>
    %134 = vector.extract_strided_slice %0 {offsets = [2, 0], sizes = [1, 256], strides = [1, 1]} : vector<9x256xf32> to vector<1x256xf32>
    %135 = vector.broadcast %134 : vector<1x256xf32> to vector<8x256xf32>
    %136 = arith.mulf %133, %135 : vector<8x256xf32>
    %c0_80 = arith.constant 0 : index
    %c16_81 = arith.constant 16 : index
    %137 = vector.load %arg8[%c0_80, %c16_81] : memref<8x290xf32, #tpu.memory_space<vmem>>, vector<8x256xf32>
    %138 = vector.extract_strided_slice %0 {offsets = [3, 0], sizes = [1, 256], strides = [1, 1]} : vector<9x256xf32> to vector<1x256xf32>
    %139 = vector.broadcast %138 : vector<1x256xf32> to vector<8x256xf32>
    %140 = arith.mulf %137, %139 : vector<8x256xf32>
    %c0_82 = arith.constant 0 : index
    %c17_83 = arith.constant 17 : index
    %141 = vector.load %arg8[%c0_82, %c17_83] : memref<8x290xf32, #tpu.memory_space<vmem>>, vector<8x256xf32>
    %c0_84 = arith.constant 0 : index
    %c18_85 = arith.constant 18 : index
    %142 = vector.load %arg8[%c0_84, %c18_85] : memref<8x290xf32, #tpu.memory_space<vmem>>, vector<8x256xf32>
    %143 = vector.extract_strided_slice %0 {offsets = [5, 0], sizes = [1, 256], strides = [1, 1]} : vector<9x256xf32> to vector<1x256xf32>
    %144 = vector.broadcast %143 : vector<1x256xf32> to vector<8x256xf32>
    %145 = arith.mulf %142, %144 : vector<8x256xf32>
    %c0_86 = arith.constant 0 : index
    %c32_87 = arith.constant 32 : index
    %146 = vector.load %arg8[%c0_86, %c32_87] : memref<8x290xf32, #tpu.memory_space<vmem>>, vector<8x256xf32>
    %147 = vector.extract_strided_slice %0 {offsets = [6, 0], sizes = [1, 256], strides = [1, 1]} : vector<9x256xf32> to vector<1x256xf32>
    %148 = vector.broadcast %147 : vector<1x256xf32> to vector<8x256xf32>
    %149 = arith.mulf %146, %148 : vector<8x256xf32>
    %c0_88 = arith.constant 0 : index
    %c33_89 = arith.constant 33 : index
    %150 = vector.load %arg8[%c0_88, %c33_89] : memref<8x290xf32, #tpu.memory_space<vmem>>, vector<8x256xf32>
    %151 = vector.extract_strided_slice %0 {offsets = [7, 0], sizes = [1, 256], strides = [1, 1]} : vector<9x256xf32> to vector<1x256xf32>
    %152 = vector.broadcast %151 : vector<1x256xf32> to vector<8x256xf32>
    %153 = arith.mulf %150, %152 : vector<8x256xf32>
    %c0_90 = arith.constant 0 : index
    %c34_91 = arith.constant 34 : index
    %154 = vector.load %arg8[%c0_90, %c34_91] : memref<8x290xf32, #tpu.memory_space<vmem>>, vector<8x256xf32>
    %155 = vector.extract_strided_slice %0 {offsets = [8, 0], sizes = [1, 256], strides = [1, 1]} : vector<9x256xf32> to vector<1x256xf32>
    %156 = vector.broadcast %155 : vector<1x256xf32> to vector<8x256xf32>
    %157 = arith.mulf %154, %156 : vector<8x256xf32>
    %158 = tpu.concatenate %128, %132, %136, %140, %141, %145, %149, %153, %157, %4 in 0 : vector<8x256xf32>, vector<8x256xf32>, vector<8x256xf32>, vector<8x256xf32>, vector<8x256xf32>, vector<8x256xf32>, vector<8x256xf32>, vector<8x256xf32>, vector<8x256xf32>, vector<8x256xf32> -> vector<80x256xf32>
    %159 = arith.truncf %158 : vector<80x256xf32> to vector<80x256xbf16>
    %c0_92 = arith.constant 0 : index
    %c768 = arith.constant 768 : index
    %160 = vector.load %arg9[%c0_92, %c768] : memref<80x1024xbf16, #tpu.memory_space<vmem>>, vector<80x256xbf16>
    tpu.vector_store %arg9[%c0_92, %c768], %159 {strides = array<i32>} : memref<80x1024xbf16, #tpu.memory_space<vmem>>, vector<80x256xbf16>,
    %c0_93 = arith.constant 0 : index
    %c0_94 = arith.constant 0 : index
    %161 = vector.load %arg3[%c0_93, %c0_94] : memref<32x80xbf16, #tpu.memory_space<vmem>>, vector<32x80xbf16>
    %c0_95 = arith.constant 0 : index
    %c0_96 = arith.constant 0 : index
    %162 = vector.load %arg9[%c0_95, %c0_96] : memref<80x1024xbf16, #tpu.memory_space<vmem>>, vector<80x1024xbf16>
    %cst_97 = arith.constant dense<0.000000e+00> : vector<32x1024xf32>
    %163 = tpu.matmul %161, %162, %cst_97 {dimension_numbers = #tpu.dot_dimension_numbers<[1], [0], [0], [1], [0, 0, 1, 1], [], []>} : vector<32x80xbf16>, vector<80x1024xbf16>, vector<32x1024xf32> -> vector<32x1024xf32>
    %c0_98 = arith.constant 0 : index
    %c0_99 = arith.constant 0 : index
    %164 = vector.load %arg4[%c0_98, %c0_99] : memref<32x256xf32, #tpu.memory_space<vmem>>, vector<32x256xf32>
    %165 = vector.extract_strided_slice %163 {offsets = [0, 0], sizes = [32, 256], strides = [1, 1]} : vector<32x1024xf32> to vector<32x256xf32>
    %166 = arith.addf %165, %164 : vector<32x256xf32>
    %cst_100 = arith.constant 0.000000e+00 : f32
    %167 = vector.broadcast %cst_100 : f32 to vector<32x256xf32>
    %168 = arith.maximumf %166, %167 : vector<32x256xf32>
    %169 = arith.truncf %168 : vector<32x256xf32> to vector<32x256xbf16>
    %170 = vector.extract_strided_slice %163 {offsets = [0, 256], sizes = [32, 256], strides = [1, 1]} : vector<32x1024xf32> to vector<32x256xf32>
    %171 = arith.addf %170, %164 : vector<32x256xf32>
    %cst_101 = arith.constant 0.000000e+00 : f32
    %172 = vector.broadcast %cst_101 : f32 to vector<32x256xf32>
    %173 = arith.maximumf %171, %172 : vector<32x256xf32>
    %174 = arith.truncf %173 : vector<32x256xf32> to vector<32x256xbf16>
    %175 = vector.extract_strided_slice %163 {offsets = [0, 512], sizes = [32, 256], strides = [1, 1]} : vector<32x1024xf32> to vector<32x256xf32>
    %176 = arith.addf %175, %164 : vector<32x256xf32>
    %cst_102 = arith.constant 0.000000e+00 : f32
    %177 = vector.broadcast %cst_102 : f32 to vector<32x256xf32>
    %178 = arith.maximumf %176, %177 : vector<32x256xf32>
    %179 = arith.truncf %178 : vector<32x256xf32> to vector<32x256xbf16>
    %180 = vector.extract_strided_slice %163 {offsets = [0, 768], sizes = [32, 256], strides = [1, 1]} : vector<32x1024xf32> to vector<32x256xf32>
    %181 = arith.addf %180, %164 : vector<32x256xf32>
    %cst_103 = arith.constant 0.000000e+00 : f32
    %182 = vector.broadcast %cst_103 : f32 to vector<32x256xf32>
    %183 = arith.maximumf %181, %182 : vector<32x256xf32>
    %184 = arith.truncf %183 : vector<32x256xf32> to vector<32x256xbf16>
    %185 = tpu.concatenate %169, %174, %179, %184 in 1 : vector<32x256xbf16>, vector<32x256xbf16>, vector<32x256xbf16>, vector<32x256xbf16> -> vector<32x1024xbf16>
    %c0_104 = arith.constant 0 : index
    %c0_105 = arith.constant 0 : index
    %186 = vector.load %arg5[%c0_104, %c0_105] : memref<8x32xbf16, #tpu.memory_space<vmem>>, vector<8x32xbf16>
    %cst_106 = arith.constant dense<0.000000e+00> : vector<8x1024xf32>
    %187 = tpu.matmul %186, %185, %cst_106 {dimension_numbers = #tpu.dot_dimension_numbers<[1], [0], [0], [1], [0, 0, 1, 1], [], []>} : vector<8x32xbf16>, vector<32x1024xbf16>, vector<8x1024xf32> -> vector<8x1024xf32>
    %c0_107 = arith.constant 0 : index
    %c0_108 = arith.constant 0 : index
    %188 = vector.load %arg6[%c0_107, %c0_108] : memref<8x1xf32, #tpu.memory_space<vmem>>, vector<8x1xf32>
    %c0_109 = arith.constant 0 : index
    %c0_110 = arith.constant 0 : index
    %c0_111 = arith.constant 0 : index
    %189 = vector.load %arg1[%c0_109, %c0_110, %c0_111] : memref<4x8x256xf32, #tpu.memory_space<vmem>>, vector<1x8x256xf32>
    %190 = vector.shape_cast %189 : vector<1x8x256xf32> to vector<8x256xf32>
    %191 = vector.extract_strided_slice %187 {offsets = [0, 0], sizes = [8, 256], strides = [1, 1]} : vector<8x1024xf32> to vector<8x256xf32>
    %192 = arith.addf %190, %191 : vector<8x256xf32>
    %193 = vector.broadcast %188 : vector<8x1xf32> to vector<8x256xf32>
    %194 = arith.addf %192, %193 : vector<8x256xf32>
    %cst_112 = arith.constant 0.000000e+00 : f32
    %195 = vector.broadcast %cst_112 : f32 to vector<8x256xf32>
    %196 = arith.maximumf %194, %195 : vector<8x256xf32>
    %c0_113 = arith.constant 0 : index
    %c0_114 = arith.constant 0 : index
    %c0_115 = arith.constant 0 : index
    %197 = vector.load %arg7[%c0_113, %c0_114, %c0_115] : memref<4x8x256xf32, #tpu.memory_space<vmem>>, vector<1x8x256xf32>
    %198 = vector.shape_cast %197 : vector<1x8x256xf32> to vector<8x256xf32>
    %199 = vector.shape_cast %196 : vector<8x256xf32> to vector<1x8x256xf32>
    tpu.vector_store %arg7[%c0_113, %c0_114, %c0_115], %199 {strides = array<i32>} : memref<4x8x256xf32, #tpu.memory_space<vmem>>, vector<1x8x256xf32>,
    %c1_116 = arith.constant 1 : index
    %c0_117 = arith.constant 0 : index
    %c0_118 = arith.constant 0 : index
    %200 = vector.load %arg1[%c1_116, %c0_117, %c0_118] : memref<4x8x256xf32, #tpu.memory_space<vmem>>, vector<1x8x256xf32>
    %201 = vector.shape_cast %200 : vector<1x8x256xf32> to vector<8x256xf32>
    %202 = vector.extract_strided_slice %187 {offsets = [0, 256], sizes = [8, 256], strides = [1, 1]} : vector<8x1024xf32> to vector<8x256xf32>
    %203 = arith.addf %201, %202 : vector<8x256xf32>
    %204 = vector.broadcast %188 : vector<8x1xf32> to vector<8x256xf32>
    %205 = arith.addf %203, %204 : vector<8x256xf32>
    %cst_119 = arith.constant 0.000000e+00 : f32
    %206 = vector.broadcast %cst_119 : f32 to vector<8x256xf32>
    %207 = arith.maximumf %205, %206 : vector<8x256xf32>
    %c1_120 = arith.constant 1 : index
    %c0_121 = arith.constant 0 : index
    %c0_122 = arith.constant 0 : index
    %208 = vector.load %arg7[%c1_120, %c0_121, %c0_122] : memref<4x8x256xf32, #tpu.memory_space<vmem>>, vector<1x8x256xf32>
    %209 = vector.shape_cast %208 : vector<1x8x256xf32> to vector<8x256xf32>
    %210 = vector.shape_cast %207 : vector<8x256xf32> to vector<1x8x256xf32>
    tpu.vector_store %arg7[%c1_120, %c0_121, %c0_122], %210 {strides = array<i32>} : memref<4x8x256xf32, #tpu.memory_space<vmem>>, vector<1x8x256xf32>,
    %c2_123 = arith.constant 2 : index
    %c0_124 = arith.constant 0 : index
    %c0_125 = arith.constant 0 : index
    %211 = vector.load %arg1[%c2_123, %c0_124, %c0_125] : memref<4x8x256xf32, #tpu.memory_space<vmem>>, vector<1x8x256xf32>
    %212 = vector.shape_cast %211 : vector<1x8x256xf32> to vector<8x256xf32>
    %213 = vector.extract_strided_slice %187 {offsets = [0, 512], sizes = [8, 256], strides = [1, 1]} : vector<8x1024xf32> to vector<8x256xf32>
    %214 = arith.addf %212, %213 : vector<8x256xf32>
    %215 = vector.broadcast %188 : vector<8x1xf32> to vector<8x256xf32>
    %216 = arith.addf %214, %215 : vector<8x256xf32>
    %cst_126 = arith.constant 0.000000e+00 : f32
    %217 = vector.broadcast %cst_126 : f32 to vector<8x256xf32>
    %218 = arith.maximumf %216, %217 : vector<8x256xf32>
    %c2_127 = arith.constant 2 : index
    %c0_128 = arith.constant 0 : index
    %c0_129 = arith.constant 0 : index
    %219 = vector.load %arg7[%c2_127, %c0_128, %c0_129] : memref<4x8x256xf32, #tpu.memory_space<vmem>>, vector<1x8x256xf32>
    %220 = vector.shape_cast %219 : vector<1x8x256xf32> to vector<8x256xf32>
    %221 = vector.shape_cast %218 : vector<8x256xf32> to vector<1x8x256xf32>
    tpu.vector_store %arg7[%c2_127, %c0_128, %c0_129], %221 {strides = array<i32>} : memref<4x8x256xf32, #tpu.memory_space<vmem>>, vector<1x8x256xf32>,
    %c3_130 = arith.constant 3 : index
    %c0_131 = arith.constant 0 : index
    %c0_132 = arith.constant 0 : index
    %222 = vector.load %arg1[%c3_130, %c0_131, %c0_132] : memref<4x8x256xf32, #tpu.memory_space<vmem>>, vector<1x8x256xf32>
    %223 = vector.shape_cast %222 : vector<1x8x256xf32> to vector<8x256xf32>
    %224 = vector.extract_strided_slice %187 {offsets = [0, 768], sizes = [8, 256], strides = [1, 1]} : vector<8x1024xf32> to vector<8x256xf32>
    %225 = arith.addf %223, %224 : vector<8x256xf32>
    %226 = vector.broadcast %188 : vector<8x1xf32> to vector<8x256xf32>
    %227 = arith.addf %225, %226 : vector<8x256xf32>
    %cst_133 = arith.constant 0.000000e+00 : f32
    %228 = vector.broadcast %cst_133 : f32 to vector<8x256xf32>
    %229 = arith.maximumf %227, %228 : vector<8x256xf32>
    %c3_134 = arith.constant 3 : index
    %c0_135 = arith.constant 0 : index
    %c0_136 = arith.constant 0 : index
    %230 = vector.load %arg7[%c3_134, %c0_135, %c0_136] : memref<4x8x256xf32, #tpu.memory_space<vmem>>, vector<1x8x256xf32>
    %231 = vector.shape_cast %230 : vector<1x8x256xf32> to vector<8x256xf32>
    %232 = vector.shape_cast %229 : vector<8x256xf32> to vector<1x8x256xf32>
    tpu.vector_store %arg7[%c3_134, %c0_135, %c0_136], %232 {strides = array<i32>} : memref<4x8x256xf32, #tpu.memory_space<vmem>>, vector<1x8x256xf32>,
    return
  }
  func.func @transform_0(%arg0: i32) -> (i32, i32, i32) {
    %c0_i32 = arith.constant 0 : i32
    %c0_i32_0 = arith.constant 0 : i32
    %c0_i32_1 = arith.constant 0 : i32
    return %arg0, %c0_i32, %c0_i32_0 : i32, i32, i32
  }
  func.func @transform_1(%arg0: i32) -> (i32, i32) {
    %c0_i32 = arith.constant 0 : i32
    %c0_i32_0 = arith.constant 0 : i32
    %c0_i32_1 = arith.constant 0 : i32
    return %c0_i32, %c0_i32_0 : i32, i32
  }
  func.func @transform_2(%arg0: i32) -> (i32, i32) {
    %c0_i32 = arith.constant 0 : i32
    %c0_i32_0 = arith.constant 0 : i32
    %c0_i32_1 = arith.constant 0 : i32
    return %c0_i32, %c0_i32_0 : i32, i32
  }
  func.func @transform_3(%arg0: i32) -> (i32, i32) {
    %c0_i32 = arith.constant 0 : i32
    %c0_i32_0 = arith.constant 0 : i32
    %c0_i32_1 = arith.constant 0 : i32
    return %c0_i32, %c0_i32_0 : i32, i32
  }
  func.func @transform_4(%arg0: i32) -> (i32, i32) {
    %c0_i32 = arith.constant 0 : i32
    %c0_i32_0 = arith.constant 0 : i32
    %c0_i32_1 = arith.constant 0 : i32
    return %c0_i32, %c0_i32_0 : i32, i32
  }
  func.func @transform_5(%arg0: i32) -> (i32, i32) {
    %c0_i32 = arith.constant 0 : i32
    %c0_i32_0 = arith.constant 0 : i32
    %c0_i32_1 = arith.constant 0 : i32
    return %c0_i32, %c0_i32_0 : i32, i32
  }
  func.func @transform_6(%arg0: i32) -> (i32, i32, i32) {
    %c0_i32 = arith.constant 0 : i32
    %c0_i32_0 = arith.constant 0 : i32
    %c0_i32_1 = arith.constant 0 : i32
    return %arg0, %c0_i32, %c0_i32_0 : i32, i32, i32
  }
}

</mosaic_0001>

<llo_original>
// kernel: tpu_custom_call.1
$region0: #{tpu_custom_call.1}
  #allocation0 [shape = 'u32[]', space=smem, size = 0x4, offset = 0x4, fixed_abs, tag = 'smem constant byte address 0x4 - core index']
  #allocation1 [shape = 'u32[144,128]{1,0:T(1,128)}', space=vmem, size = 0x12000, scoped, tag = 'internal scratch']
  #allocation2 [shape = 'f32[8,290]{1,0:T(8,128)}', space=vmem, size = 0x3000, scoped, tag = 'scratch operand']
  #allocation3 [shape = 'bf16[80,1024]{1,0:T(8,128)(2,1)}', space=vmem, size = 0x28000, scoped, tag = 'scratch operand']
  %s0 = inlined_call_operand.hbm [shape: f32[8,8,256], index: 0, kind: input, shape index: {}]
  %s1 = inlined_call_operand.hbm [shape: f32[9,256], index: 1, kind: input, shape index: {}]
  %s2 = inlined_call_operand.hbm [shape: bf16[32,80], index: 2, kind: input, shape index: {}]
  %s3 = inlined_call_operand.hbm [shape: f32[32,256], index: 3, kind: input, shape index: {}]
  %s4 = inlined_call_operand.vmem [shape: bf16[8,32], index: 4, kind: input, shape index: {}]
  %s5 = inlined_call_operand.vmem [shape: f32[8,1], index: 5, kind: input, shape index: {}]
  %s6 = inlined_call_operand.hbm [shape: f32[8,8,256], index: 6, kind: output, shape index: {}]
  %s7 = sld [smem:[#allocation0]]
  $region73: #{tpu_custom_call.1} parent=0
    _
  %s9 = ssub.s32 1, %s7
  %s10 = scalar_select 0, %s9, %s7
  $region1: #{tpu_custom_call.1} parent=0
    #allocation4 [shape = 'u8[65536]{0}', space=vmem, size = 0x10000, scoped, tag = 'input window, operand 0']
    #allocation5 [shape = 's32[2]{0}', space=sflag, size = 0x8, scoped, tag = 'scoped memory for tpu_custom_call.1']
    #allocation6 [shape = 's32[2]{0}', space=sflag, size = 0x8, scoped, tag = 'scoped memory for tpu_custom_call.1']
    #allocation7 [shape = 'u8[16384]{0}', space=vmem, size = 0x4000, scoped, tag = 'input window, operand 1, single buffered']
    #allocation8 [shape = 's32[1]{0}', space=sflag, size = 0x4, scoped, tag = 'scoped memory for tpu_custom_call.1']
    #allocation9 [shape = 'u8[8192]{0}', space=vmem, size = 0x2000, scoped, tag = 'input window, operand 2, single buffered']
    #allocation10 [shape = 'u8[32768]{0}', space=vmem, size = 0x8000, scoped, tag = 'input window, operand 3, single buffered']
    #allocation11 [shape = 's32[1]{0}', space=sflag, size = 0x4, scoped, tag = 'scoped memory for tpu_custom_call.1']
    #allocation12 [shape = 'u8[65536]{0}', space=vmem, size = 0x10000, scoped, tag = 'output window, operand 0']
    %11 = vsyncpa [#allocation5], 0
    %s12 = scalar_lea.sflag [#allocation5], 1
    %13 = vsyncpa %s12, 0
    %14 = vsyncpa [#allocation8], 0
    %15 = vsyncpa [#allocation11], 0
    %16 = vsyncpa [#allocation6], 0
    %s17 = scalar_lea.sflag [#allocation6], 1
    %18 = vsyncpa %s17, 0
    loop: start=0, step=1, limit=4
    $region2: #{tpu_custom_call.1} parent=1 // loop_pre_header
      _
    $region3: #{tpu_custom_call.1} parent=1 // loop_header
      %s20 = sphi 0, %s24
      %p21 = scmp.ge.s32.totalorder %s20, 4
      %s30 = sphi 0, %s32
      %s33 = sphi 0, %s30
      %s34 = sphi 0, %s33
      %s50 = sphi 0, %s34
      %s54 = sphi 0, %s54
      %s56 = sphi 0, %s54
      %s57 = sphi 0, %s56
      %s71 = sphi 0, %s57
      %s75 = sphi 0, %s75
      %s77 = sphi 0, %s75
      %s78 = sphi 0, %s77
      %s92 = sphi 0, %s78
      %s96 = sphi 0, %s96
      %s98 = sphi 0, %s96
      %s99 = sphi 0, %s98
      %s113 = sphi 0, %s99
      %s117 = sphi 0, %s117
      %s119 = sphi 0, %s117
      %s120 = sphi 0, %s119
      %s134 = sphi 0, %s120
      %s138 = sphi 0, %s138
      %s140 = sphi 0, %s138
      %s141 = sphi 0, %s140
      %s155 = sphi 0, %s141
      %s161 = sphi 0, %s163
      %s164 = sphi 0, %s161
      %s165 = sphi 0, %s164
      %s181 = sphi 0, %s165
    $region4: #{tpu_custom_call.1} parent=1 // loop_header_branch
      %23 = sbr.rel (%p21) target = $region8
    $region5: #{tpu_custom_call.1} parent=1 // loop_body
      %s25 = ssub.s32 %s20, 1
      %s26 = ssub.s32 %s20, 2
      %s27 = sadd.s32 %s20, 1
      %s28 = ssub.s32 %s20, %s27
      %p29 = scmp.eq.s32.totalorder %s28, 0
      %s31 = sadd.s32 %s30, 1
      %s32 = scalar_select %p29, %s30, %s31
      %p35 = pneg %p29
      %p36 = scmp.eq.s32.totalorder %s20, 1
      %p37 = por %p35, %p36
      %p38 = scmp.ne.s32.totalorder %s30, %s33
      %p39 = scmp.eq.s32.totalorder %s20, 0
      %p40 = por %p38, %p39
      %p41 = scmp.ne.s32.totalorder %s30, %s33
      %p42 = scmp.eq.s32.totalorder %s25, 1
      %p43 = por %p41, %p42
      %p44 = scmp.ne.s32.totalorder %s33, %s34
      %p45 = scmp.eq.s32.totalorder %s25, 0
      %p46 = por %p44, %p45
      %p47 = scmp.ne.s32.totalorder %s33, %s34
      %p48 = scmp.eq.s32.totalorder %s26, 1
      %p49 = por %p47, %p48
      %p51 = scmp.ne.s32.totalorder %s34, %s50
      %p52 = scmp.eq.s32.totalorder %s26, 0
      %p53 = por %p51, %p52
      %s55 = sadd.s32 %s54, 1
      %p58 = scmp.eq.s32.totalorder %s20, 1
      %p59 = scmp.ne.s32.totalorder %s54, %s56
      %p60 = scmp.eq.s32.totalorder %s20, 0
      %p61 = por %p59, %p60
      %p62 = scmp.ne.s32.totalorder %s54, %s56
      %p63 = scmp.eq.s32.totalorder %s25, 1
      %p64 = por %p62, %p63
      %p65 = scmp.ne.s32.totalorder %s56, %s57
      %p66 = scmp.eq.s32.totalorder %s25, 0
      %p67 = por %p65, %p66
      %p68 = scmp.ne.s32.totalorder %s56, %s57
      %p69 = scmp.eq.s32.totalorder %s26, 1
      %p70 = por %p68, %p69
      %p72 = scmp.ne.s32.totalorder %s57, %s71
      %p73 = scmp.eq.s32.totalorder %s26, 0
      %p74 = por %p72, %p73
      %s76 = sadd.s32 %s75, 1
      %p79 = scmp.eq.s32.totalorder %s20, 1
      %p80 = scmp.ne.s32.totalorder %s75, %s77
      %p81 = scmp.eq.s32.totalorder %s20, 0
      %p82 = por %p80, %p81
      %p83 = scmp.ne.s32.totalorder %s75, %s77
      %p84 = scmp.eq.s32.totalorder %s25, 1
      %p85 = por %p83, %p84
      %p86 = scmp.ne.s32.totalorder %s77, %s78
      %p87 = scmp.eq.s32.totalorder %s25, 0
      %p88 = por %p86, %p87
      %p89 = scmp.ne.s32.totalorder %s77, %s78
      %p90 = scmp.eq.s32.totalorder %s26, 1
      %p91 = por %p89, %p90
      %p93 = scmp.ne.s32.totalorder %s78, %s92
      %p94 = scmp.eq.s32.totalorder %s26, 0
      %p95 = por %p93, %p94
      %s97 = sadd.s32 %s96, 1
      %p100 = scmp.eq.s32.totalorder %s20, 1
      %p101 = scmp.ne.s32.totalorder %s96, %s98
      %p102 = scmp.eq.s32.totalorder %s20, 0
      %p103 = por %p101, %p102
      %p104 = scmp.ne.s32.totalorder %s96, %s98
      %p105 = scmp.eq.s32.totalorder %s25, 1
      %p106 = por %p104, %p105
      %p107 = scmp.ne.s32.totalorder %s98, %s99
      %p108 = scmp.eq.s32.totalorder %s25, 0
      %p109 = por %p107, %p108
      %p110 = scmp.ne.s32.totalorder %s98, %s99
      %p111 = scmp.eq.s32.totalorder %s26, 1
      %p112 = por %p110, %p111
      %p114 = scmp.ne.s32.totalorder %s99, %s113
      %p115 = scmp.eq.s32.totalorder %s26, 0
      %p116 = por %p114, %p115
      %s118 = sadd.s32 %s117, 1
      %p121 = scmp.eq.s32.totalorder %s20, 1
      %p122 = scmp.ne.s32.totalorder %s117, %s119
      %p123 = scmp.eq.s32.totalorder %s20, 0
      %p124 = por %p122, %p123
      %p125 = scmp.ne.s32.totalorder %s117, %s119
      %p126 = scmp.eq.s32.totalorder %s25, 1
      %p127 = por %p125, %p126
      %p128 = scmp.ne.s32.totalorder %s119, %s120
      %p129 = scmp.eq.s32.totalorder %s25, 0
      %p130 = por %p128, %p129
      %p131 = scmp.ne.s32.totalorder %s119, %s120
      %p132 = scmp.eq.s32.totalorder %s26, 1
      %p133 = por %p131, %p132
      %p135 = scmp.ne.s32.totalorder %s120, %s134
      %p136 = scmp.eq.s32.totalorder %s26, 0
      %p137 = por %p135, %p136
      %s139 = sadd.s32 %s138, 1
      %p142 = scmp.eq.s32.totalorder %s20, 1
      %p143 = scmp.ne.s32.totalorder %s138, %s140
      %p144 = scmp.eq.s32.totalorder %s20, 0
      %p145 = por %p143, %p144
      %p146 = scmp.ne.s32.totalorder %s138, %s140
      %p147 = scmp.eq.s32.totalorder %s25, 1
      %p148 = por %p146, %p147
      %p149 = scmp.ne.s32.totalorder %s140, %s141
      %p150 = scmp.eq.s32.totalorder %s25, 0
      %p151 = por %p149, %p150
      %p152 = scmp.ne.s32.totalorder %s140, %s141
      %p153 = scmp.eq.s32.totalorder %s26, 1
      %p154 = por %p152, %p153
      %p156 = scmp.ne.s32.totalorder %s141, %s155
      %p157 = scmp.eq.s32.totalorder %s26, 0
      %p158 = por %p156, %p157
      %s159 = ssub.s32 %s20, %s27
      %p160 = scmp.eq.s32.totalorder %s159, 0
      %s162 = sadd.s32 %s161, 1
      %s163 = scalar_select %p160, %s161, %s162
      %p166 = pneg %p160
      %p167 = scmp.eq.s32.totalorder %s20, 1
      %p168 = por %p166, %p167
      %p169 = scmp.ne.s32.totalorder %s161, %s164
      %p170 = scmp.eq.s32.totalorder %s20, 0
      %p171 = por %p169, %p170
      %p172 = scmp.ne.s32.totalorder %s161, %s164
      %p173 = scmp.eq.s32.totalorder %s25, 1
      %p174 = por %p172, %p173
      %p175 = scmp.ne.s32.totalorder %s164, %s165
      %p176 = scmp.eq.s32.totalorder %s25, 0
      %p177 = por %p175, %p176
      %p178 = scmp.ne.s32.totalorder %s164, %s165
      %p179 = scmp.eq.s32.totalorder %s26, 1
      %p180 = por %p178, %p179
      %p182 = scmp.ne.s32.totalorder %s165, %s181
      %p183 = scmp.eq.s32.totalorder %s26, 0
      %p184 = por %p182, %p183
      %p185 = scmp.le.s32.totalorder 1, %s20
      %p186 = scmp.lt.s32.totalorder %s20, 3
      %p187 = pnand %p185, %p186
      %p188 = pneg %p187
      // Predicated region
      $region9: #{tpu_custom_call.1} parent=5 // pred_check
        _
      $region10: #{tpu_custom_call.1} parent=5 // pred_check_branch
        %190 = sbr.rel (%p187) target = $region12
      $region11: #{tpu_custom_call.1} parent=5 // pred_region
        %s191 = ssub.s32 %s20, 1
        // Predicated region
        $region13: #{tpu_custom_call.1} parent=11 // pred_check
          %p192 = pneg %p67
        $region14: #{tpu_custom_call.1} parent=11 // pred_check_branch
          %194 = sbr.rel (%p192) target = $region16
        $region15: #{tpu_custom_call.1} parent=11 // pred_region
          %s196 = ssub.s32 512, 512
          %197 = vsyncadd [#allocation8], %s196
          %s198 = sshll.u32 [#allocation7], 4
          %s199 = int_to_ptr.vmem [resolvable:$true] %s198
          %204 = dma.hbm_to_vmem [thread:$0]  %s1, 512, %s199, [#allocation8], 256, 256, 16
        $region16: #{tpu_custom_call.1} parent=11 // pred_fallthru
          _
        // Predicated region
        $region17: #{tpu_custom_call.1} parent=11 // pred_check
          %p205 = pneg %p88
        $region18: #{tpu_custom_call.1} parent=11 // pred_check_branch
          %207 = sbr.rel (%p205) target = $region20
        $region19: #{tpu_custom_call.1} parent=11 // pred_region
          %s209 = ssub.s32 256, 256
          %210 = vsyncadd [#allocation8], %s209
          %s211 = sshll.u32 [#allocation9], 4
          %s212 = int_to_ptr.vmem [resolvable:$true] %s211
          %217 = dma.hbm_to_vmem [thread:$0]  %s2, 256, %s212, [#allocation8], 64, 64, 4
        $region20: #{tpu_custom_call.1} parent=11 // pred_fallthru
          _
        // Predicated region
        $region21: #{tpu_custom_call.1} parent=11 // pred_check
          %p218 = pneg %p109
        $region22: #{tpu_custom_call.1} parent=11 // pred_check_branch
          %220 = sbr.rel (%p218) target = $region24
        $region23: #{tpu_custom_call.1} parent=11 // pred_region
          %s222 = ssub.s32 1024, 1024
          %223 = vsyncadd [#allocation11], %s222
          %s224 = sshll.u32 [#allocation10], 4
          %s225 = int_to_ptr.vmem [resolvable:$true] %s224
          %230 = dma.hbm_to_vmem [thread:$0]  %s3, 1024, %s225, [#allocation11], 256, 256, 16
        $region24: #{tpu_custom_call.1} parent=11 // pred_fallthru
          _
        // Predicated region
        $region25: #{tpu_custom_call.1} parent=11 // pred_check
          %p231 = pneg %p130
        $region26: #{tpu_custom_call.1} parent=11 // pred_check_branch
          %233 = sbr.rel (%p231) target = $region28
        $region27: #{tpu_custom_call.1} parent=11 // pred_region
          _
        $region28: #{tpu_custom_call.1} parent=11 // pred_fallthru
          _
        // Predicated region
        $region29: #{tpu_custom_call.1} parent=11 // pred_check
          %p234 = pneg %p151
        $region30: #{tpu_custom_call.1} parent=11 // pred_check_branch
          %236 = sbr.rel (%p234) target = $region32
        $region31: #{tpu_custom_call.1} parent=11 // pred_region
          _
        $region32: #{tpu_custom_call.1} parent=11 // pred_fallthru
          _
      $region12: #{tpu_custom_call.1} parent=5 // pred_fallthru
        _
      %p237 = scmp.lt.s32.totalorder %s20, 2
      // Predicated region
      $region33: #{tpu_custom_call.1} parent=5 // pred_check
        %p238 = pneg %p237
      $region34: #{tpu_custom_call.1} parent=5 // pred_check_branch
        %240 = sbr.rel (%p238) target = $region36
      $region35: #{tpu_custom_call.1} parent=5 // pred_region
        // Predicated region
        $region37: #{tpu_custom_call.1} parent=35 // pred_check
          %p241 = pneg %p40
        $region38: #{tpu_custom_call.1} parent=35 // pred_check_branch
          %243 = sbr.rel (%p241) target = $region40
        $region39: #{tpu_custom_call.1} parent=35 // pred_region
          %s244 = sand.u32 %s30, 1
          %s245 = scalar_lea.sflag [#allocation5], %s244
          %s246 = sand.u32 %s30, 1
          %s247 = smul.addr %s246, 64
          %s248 = scalar_lea.vmem [#allocation4], %s247
          %s249 = smul.u32 4, %s20
          %s251 = ssub.s32 1024, 1024
          %252 = vsyncadd %s245, %s251
          %s253 = smul.addr %s249, 2
          %s254 = smul.addr %s253, 128
          %s255 = scalar_lea.hbm %s0, %s254
          %s256 = sshll.u32 %s248, 4
          %s257 = int_to_ptr.vmem [resolvable:$true] %s256
          %262 = dma.hbm_to_vmem [thread:$0]  %s255, 1024, %s257, %s245, 256, 256, 16
        $region40: #{tpu_custom_call.1} parent=35 // pred_fallthru
          _
      $region36: #{tpu_custom_call.1} parent=5 // pred_fallthru
        _
      %p263 = scmp.le.s32.totalorder 1, %s20
      %p264 = scmp.lt.s32.totalorder %s20, 3
      %p265 = pnand %p263, %p264
      %p266 = pneg %p265
      // Predicated region
      $region41: #{tpu_custom_call.1} parent=5 // pred_check
        _
      $region42: #{tpu_custom_call.1} parent=5 // pred_check_branch
        %268 = sbr.rel (%p265) target = $region44
      $region43: #{tpu_custom_call.1} parent=5 // pred_region
        %s269 = ssub.s32 %s20, 1
        %s270 = sand.u32 %s33, 1
        %s271 = scalar_lea.sflag [#allocation5], %s270
        %s272 = sand.u32 %s33, 1
        %s273 = smul.addr %s272, 64
        %s274 = scalar_lea.vmem [#allocation4], %s273
        // Predicated region
        $region45: #{tpu_custom_call.1} parent=43 // pred_check
          %p275 = pneg %p46
        $region46: #{tpu_custom_call.1} parent=43 // pred_check_branch
          %277 = sbr.rel (%p275) target = $region48
        $region47: #{tpu_custom_call.1} parent=43 // pred_region
          %278 = dma.done %s271, 1024
        $region48: #{tpu_custom_call.1} parent=43 // pred_fallthru
          _
        // Predicated region
        $region49: #{tpu_custom_call.1} parent=43 // pred_check
          %p279 = pneg %p67
        $region50: #{tpu_custom_call.1} parent=43 // pred_check_branch
          %281 = sbr.rel (%p279) target = $region52
        $region51: #{tpu_custom_call.1} parent=43 // pred_region
          %282 = dma.done [#allocation8], 512
        $region52: #{tpu_custom_call.1} parent=43 // pred_fallthru
          _
        // Predicated region
        $region53: #{tpu_custom_call.1} parent=43 // pred_check
          %p283 = pneg %p88
        $region54: #{tpu_custom_call.1} parent=43 // pred_check_branch
          %285 = sbr.rel (%p283) target = $region56
        $region55: #{tpu_custom_call.1} parent=43 // pred_region
          %286 = dma.done [#allocation8], 256
        $region56: #{tpu_custom_call.1} parent=43 // pred_fallthru
          _
        // Predicated region
        $region57: #{tpu_custom_call.1} parent=43 // pred_check
          %p287 = pneg %p109
        $region58: #{tpu_custom_call.1} parent=43 // pred_check_branch
          %289 = sbr.rel (%p287) target = $region60
        $region59: #{tpu_custom_call.1} parent=43 // pred_region
          %290 = dma.done [#allocation11], 1024
        $region60: #{tpu_custom_call.1} parent=43 // pred_fallthru
          _
        %s291 = sand.u32 %s33, 1
        %s292 = scalar_lea.sflag [#allocation5], %s291
        %s293 = sand.u32 %s33, 1
        %s294 = smul.addr %s293, 64
        %s295 = scalar_lea.vmem [#allocation4], %s294
        %p296 = pneg %p46
        %p297 = pneg %p43
        %p298 = pneg %p67
        %p299 = pneg %p64
        %p300 = pneg %p88
        %p301 = pneg %p85
        %p302 = pneg %p109
        %p303 = pneg %p106
        %p304 = pneg %p130
        %p305 = pneg %p127
        %p306 = pneg %p151
        %p307 = pneg %p148
        %p308 = pneg %p177
        %p309 = pneg %p174
        %s310 = sand.u32 %s164, 1
        %s311 = scalar_lea.sflag [#allocation6], %s310
        %s312 = sand.u32 %s164, 1
        %s313 = smul.addr %s312, 64
        %s314 = scalar_lea.vmem [#allocation12], %s313
        %s315 = smul.u32 4, %s25
        %s316 = smul.u32 4, %s25
        %v318 = vld [vmem:[#allocation7] sm:$0xff]
        %v319 = vld [vmem:[#allocation7 + $0x8] sm:$0xff]
        %v320 = vld [vmem:[#allocation7 + $0x10] sm:$0x1]
        %v321 = vld [vmem:[#allocation7 + $0x18] sm:$0x1]
        %vm322 = vcmask 138240
        %323 = vst.msk [vmem:[#allocation2] sm:$0xff] %vm322, 0.0
        %vm324 = vcmask 277640
        %325 = vst.msk [vmem:[#allocation2 + $0x10] sm:$0xff] %vm324, 0.0
        %v326 = vld [vmem:[%s274] sm:$0xff]
        %v327 = vld [vmem:[%s274 + $0x8] sm:$0xff]
        %330 = vrot.lane.b32.xlu0 %v326, 17
        %v331 = vpop.permute.xlu0 %330
        %332 = vrot.lane.b32.xlu0 %v327, 17
        %v333 = vpop.permute.xlu0 %332
        %v334 = vsel %vm322, %v331, %v333
        %vm338 = vcmask 1047688
        %339 = vst.msk [vmem:[#allocation2] sm:$0xff] %vm338, %v331
        %340 = vst [vmem:[#allocation2 + $0x8] sm:$0xff] %v334
        %341 = vst.msk [vmem:[#allocation2 + $0x10] sm:$0xff] %vm322, %v333
        %v342 = vld [vmem:[#allocation2] sm:$0xff]
        %v343 = vld [vmem:[#allocation2 + $0x8] sm:$0xff]
        %v344 = vlaneseq
        %v345 = vshrl.u32 %v344, 7
        %v346 = vsub.s32 0, %v345
        %v347 = vrot.slane %v318, %v346
        %v348 = vlaneseq
        %v349 = vshrl.u32 %v348, 7
        %v350 = vsub.s32 0, %v349
        %v351 = vrot.slane %v319, %v350
        %v352 = vmul.f32 %v342, %v347
        %v353 = vmul.f32 %v343, %v351
        %v354 = vld [vmem:[#allocation2 + $0x10] sm:$0xff]
        %v355 = vlaneseq
        %v356 = vshrl.u32 %v355, 7
        %v357 = vsub.s32 1, %v356
        %v358 = vrot.slane %v318, %v357
        %v359 = vlaneseq
        %v360 = vshrl.u32 %v359, 7
        %v361 = vsub.s32 1, %v360
        %v362 = vrot.slane %v319, %v361
        %365 = vrot.lane.b32.xlu0 %v358, 1
        %v366 = vpop.permute.xlu0 %365
        %367 = vrot.lane.b32.xlu0 %v362, 1
        %v368 = vpop.permute.xlu0 %367
        %vm369 = vcmask 7168
        %v370 = vsel %vm369, %v366, %v368
        %v374 = vmul.f32 %v342, %v366
        %v375 = vmul.f32 %v343, %v370
        %v376 = vmul.f32 %v354, %v368
        %v377 = vlaneseq
        %v378 = vshrl.u32 %v377, 7
        %v379 = vsub.s32 2, %v378
        %v380 = vrot.slane %v318, %v379
        %v381 = vlaneseq
        %v382 = vshrl.u32 %v381, 7
        %v383 = vsub.s32 2, %v382
        %v384 = vrot.slane %v319, %v383
        %387 = vrot.lane.b32.xlu0 %v380, 2
        %v388 = vpop.permute.xlu0 %387
        %389 = vrot.lane.b32.xlu0 %v384, 2
        %v390 = vpop.permute.xlu0 %389
        %vm391 = vcmask 15360
        %v392 = vsel %vm391, %v388, %v390
        %v396 = vmul.f32 %v342, %v388
        %v397 = vmul.f32 %v343, %v392
        %v398 = vmul.f32 %v354, %v390
        %v399 = vlaneseq
        %v400 = vshrl.u32 %v399, 7
        %v401 = vsub.s32 3, %v400
        %v402 = vrot.slane %v318, %v401
        %v403 = vlaneseq
        %v404 = vshrl.u32 %v403, 7
        %v405 = vsub.s32 3, %v404
        %v406 = vrot.slane %v319, %v405
        %409 = vrot.lane.b32.xlu0 %v402, 16
        %v410 = vpop.permute.xlu0 %409
        %411 = vrot.lane.b32.xlu0 %v406, 16
        %v412 = vpop.permute.xlu0 %411
        %vm413 = vcmask 130048
        %v414 = vsel %vm413, %v410, %v412
        %v418 = vmul.f32 %v342, %v410
        %v419 = vmul.f32 %v343, %v414
        %v420 = vmul.f32 %v354, %v412
        %v421 = vlaneseq
        %v422 = vshrl.u32 %v421, 7
        %v423 = vsub.s32 5, %v422
        %v424 = vrot.slane %v318, %v423
        %v425 = vlaneseq
        %v426 = vshrl.u32 %v425, 7
        %v427 = vsub.s32 5, %v426
        %v428 = vrot.slane %v319, %v427
        %431 = vrot.lane.b32.xlu0 %v424, 18
        %v432 = vpop.permute.xlu0 %431
        %433 = vrot.lane.b32.xlu0 %v428, 18
        %v434 = vpop.permute.xlu0 %433
        %vm435 = vcmask 146432
        %v436 = vsel %vm435, %v432, %v434
        %v440 = vmul.f32 %v342, %v432
        %v441 = vmul.f32 %v343, %v436
        %v442 = vmul.f32 %v354, %v434
        %v443 = vlaneseq
        %v444 = vshrl.u32 %v443, 7
        %v445 = vsub.s32 6, %v444
        %v446 = vrot.slane %v318, %v445
        %v447 = vlaneseq
        %v448 = vshrl.u32 %v447, 7
        %v449 = vsub.s32 6, %v448
        %v450 = vrot.slane %v319, %v449
        %453 = vrot.lane.b32.xlu0 %v446, 32
        %v454 = vpop.permute.xlu0 %453
        %455 = vrot.lane.b32.xlu0 %v450, 32
        %v456 = vpop.permute.xlu0 %455
        %vm457 = vcmask 261120
        %v458 = vsel %vm457, %v454, %v456
        %v462 = vmul.f32 %v342, %v454
        %v463 = vmul.f32 %v343, %v458
        %v464 = vmul.f32 %v354, %v456
        %v465 = vlaneseq
        %v466 = vshrl.u32 %v465, 7
        %v467 = vsub.s32 7, %v466
        %v468 = vrot.slane %v318, %v467
        %v469 = vlaneseq
        %v470 = vshrl.u32 %v469, 7
        %v471 = vsub.s32 7, %v470
        %v472 = vrot.slane %v319, %v471
        %475 = vrot.lane.b32.xlu0 %v468, 33
        %v476 = vpop.permute.xlu0 %475
        %477 = vrot.lane.b32.xlu0 %v472, 33
        %v478 = vpop.permute.xlu0 %477
        %vm479 = vcmask 269312
        %v480 = vsel %vm479, %v476, %v478
        %v484 = vmul.f32 %v342, %v476
        %v485 = vmul.f32 %v343, %v480
        %v486 = vmul.f32 %v354, %v478
        %v487 = vlaneseq
        %v488 = vshrl.u32 %v487, 7
        %v489 = vsub.s32 0, %v488
        %v490 = vrot.slane %v320, %v489
        %v491 = vlaneseq
        %v492 = vshrl.u32 %v491, 7
        %v493 = vsub.s32 0, %v492
        %v494 = vrot.slane %v321, %v493
        %497 = vrot.lane.b32.xlu0 %v490, 34
        %v498 = vpop.permute.xlu0 %497
        %499 = vrot.lane.b32.xlu0 %v494, 34
        %v500 = vpop.permute.xlu0 %499
        %vm501 = vcmask 277504
        %v502 = vsel %vm501, %v498, %v500
        %v506 = vmul.f32 %v342, %v498
        %v507 = vmul.f32 %v343, %v502
        %v508 = vmul.f32 %v354, %v500
        %512 = vrot.lane.b32.xlu0 %v374, 127
        %v513 = vpop.permute.xlu0 %512
        %514 = vrot.lane.b32.xlu0 %v375, 127
        %v515 = vpop.permute.xlu0 %514
        %516 = vrot.lane.b32.xlu0 %v376, 127
        %v517 = vpop.permute.xlu0 %516
        %vm518 = vcmask 1039360
        %v519 = vsel %vm518, %v513, %v515
        %v520 = vsel %vm518, %v515, %v517
        %526 = vrot.lane.b32.xlu0 %v396, 126
        %v527 = vpop.permute.xlu0 %526
        %528 = vrot.lane.b32.xlu0 %v397, 126
        %v529 = vpop.permute.xlu0 %528
        %530 = vrot.lane.b32.xlu0 %v398, 126
        %v531 = vpop.permute.xlu0 %530
        %vm532 = vcmask 1031168
        %v533 = vsel %vm532, %v527, %v529
        %v534 = vsel %vm532, %v529, %v531
        %540 = vrot.lane.b32.xlu0 %v418, 112
        %v541 = vpop.permute.xlu0 %540
        %542 = vrot.lane.b32.xlu0 %v419, 112
        %v543 = vpop.permute.xlu0 %542
        %544 = vrot.lane.b32.xlu0 %v420, 112
        %v545 = vpop.permute.xlu0 %544
        %vm546 = vcmask 916480
        %v547 = vsel %vm546, %v541, %v543
        %v548 = vsel %vm546, %v543, %v545
        %554 = vrot.lane.b32.xlu0 %v342, 111
        %v555 = vpop.permute.xlu0 %554
        %556 = vrot.lane.b32.xlu0 %v343, 111
        %v557 = vpop.permute.xlu0 %556
        %558 = vrot.lane.b32.xlu0 %v354, 111
        %v559 = vpop.permute.xlu0 %558
        %vm560 = vcmask 908288
        %v561 = vsel %vm560, %v555, %v557
        %v562 = vsel %vm560, %v557, %v559
        %568 = vrot.lane.b32.xlu0 %v440, 110
        %v569 = vpop.permute.xlu0 %568
        %570 = vrot.lane.b32.xlu0 %v441, 110
        %v571 = vpop.permute.xlu0 %570
        %572 = vrot.lane.b32.xlu0 %v442, 110
        %v573 = vpop.permute.xlu0 %572
        %vm574 = vcmask 900096
        %v575 = vsel %vm574, %v569, %v571
        %v576 = vsel %vm574, %v571, %v573
        %582 = vrot.lane.b32.xlu0 %v462, 96
        %v583 = vpop.permute.xlu0 %582
        %584 = vrot.lane.b32.xlu0 %v463, 96
        %v585 = vpop.permute.xlu0 %584
        %586 = vrot.lane.b32.xlu0 %v464, 96
        %v587 = vpop.permute.xlu0 %586
        %vm588 = vcmask 785408
        %v589 = vsel %vm588, %v583, %v585
        %v590 = vsel %vm588, %v585, %v587
        %596 = vrot.lane.b32.xlu0 %v484, 95
        %v597 = vpop.permute.xlu0 %596
        %598 = vrot.lane.b32.xlu0 %v485, 95
        %v599 = vpop.permute.xlu0 %598
        %600 = vrot.lane.b32.xlu0 %v486, 95
        %v601 = vpop.permute.xlu0 %600
        %vm602 = vcmask 777216
        %v603 = vsel %vm602, %v597, %v599
        %v604 = vsel %vm602, %v599, %v601
        %610 = vrot.lane.b32.xlu0 %v506, 94
        %v611 = vpop.permute.xlu0 %610
        %612 = vrot.lane.b32.xlu0 %v507, 94
        %v613 = vpop.permute.xlu0 %612
        %614 = vrot.lane.b32.xlu0 %v508, 94
        %v615 = vpop.permute.xlu0 %614
        %vm616 = vcmask 769024
        %v617 = vsel %vm616, %v611, %v613
        %v618 = vsel %vm616, %v613, %v615
        %v621 = vpack.c.bf16 %v519, %v352
        %v622 = vpack.c.bf16 %v520, %v353
        %v623 = vpack.c.bf16 %v547, %v533
        %v624 = vpack.c.bf16 %v548, %v534
        %v625 = vpack.c.bf16 %v575, %v561
        %v626 = vpack.c.bf16 %v576, %v562
        %v627 = vpack.c.bf16 %v603, %v589
        %v628 = vpack.c.bf16 %v604, %v590
        %v629 = vpack.c.bf16 0.0, %v617
        %v630 = vpack.c.bf16 0.0, %v618
        %v641 = vunpack.c.l.b16 %v621
        %v642 = vunpack.c.l.b16 %v622
        %v643 = vunpack.c.h.b16 %v621
        %v644 = vunpack.c.h.b16 %v622
        %v645 = vunpack.c.l.b16 %v623
        %v646 = vunpack.c.l.b16 %v624
        %v647 = vunpack.c.h.b16 %v623
        %v648 = vunpack.c.h.b16 %v624
        %v649 = vunpack.c.l.b16 %v625
        %v650 = vunpack.c.l.b16 %v626
        %v651 = vunpack.c.h.b16 %v625
        %v652 = vunpack.c.h.b16 %v626
        %v653 = vunpack.c.l.b16 %v627
        %v654 = vunpack.c.l.b16 %v628
        %v655 = vunpack.c.h.b16 %v627
        %v656 = vunpack.c.h.b16 %v628
        %v657 = vunpack.c.l.b16 %v629
        %v658 = vunpack.c.l.b16 %v630
        %v659 = vunpack.c.h.b16 %v629
        %v660 = vunpack.c.h.b16 %v630
        %v661 = vpack.c.b16 %v642, %v641
        %v662 = vpack.c.b16 %v644, %v643
        %v663 = vpack.c.b16 %v646, %v645
        %v664 = vpack.c.b16 %v648, %v647
        %v665 = vpack.c.b16 %v650, %v649
        %v666 = vpack.c.b16 %v652, %v651
        %v667 = vpack.c.b16 %v654, %v653
        %v668 = vpack.c.b16 %v656, %v655
        %v669 = vpack.c.b16 %v658, %v657
        %v670 = vpack.c.b16 %v660, %v659
        %681 = vst [vmem:[#allocation3] sm:$0xff] %v661
        %682 = vst [vmem:[#allocation3 + $0x20] sm:$0xff] %v662
        %683 = vst [vmem:[#allocation3 + $0x40] sm:$0xff] %v663
        %684 = vst [vmem:[#allocation3 + $0x60] sm:$0xff] %v664
        %685 = vst [vmem:[#allocation3 + $0x80] sm:$0xff] %v665
        %686 = vst [vmem:[#allocation3 + $0xa0] sm:$0xff] %v666
        %687 = vst [vmem:[#allocation3 + $0xc0] sm:$0xff] %v667
        %688 = vst [vmem:[#allocation3 + $0xe0] sm:$0xff] %v668
        %689 = vst [vmem:[#allocation3 + $0x100] sm:$0xff] %v669
        %690 = vst [vmem:[#allocation3 + $0x120] sm:$0xff] %v670
        %s691 = scalar_lea.vmem %s274, 16 [#allocation4]
        %v692 = vld [vmem:[%s691] sm:$0xff]
        %v693 = vld [vmem:[%s691 + $0x8] sm:$0xff]
        %696 = vrot.lane.b32.xlu0 %v692, 17
        %v697 = vpop.permute.xlu0 %696
        %698 = vrot.lane.b32.xlu0 %v693, 17
        %v699 = vpop.permute.xlu0 %698
        %v700 = vsel %vm322, %v697, %v699
        %704 = vst.msk [vmem:[#allocation2] sm:$0xff] %vm338, %v697
        %705 = vst [vmem:[#allocation2 + $0x8] sm:$0xff] %v700
        %706 = vst.msk [vmem:[#allocation2 + $0x10] sm:$0xff] %vm322, %v699
        %v707 = vld [vmem:[#allocation2] sm:$0xff]
        %v708 = vld [vmem:[#allocation2 + $0x8] sm:$0xff]
        %v709 = vmul.f32 %v707, %v347
        %v710 = vmul.f32 %v708, %v351
        %v711 = vld [vmem:[#allocation2 + $0x10] sm:$0xff]
        %v712 = vmul.f32 %v707, %v366
        %v713 = vmul.f32 %v708, %v370
        %v714 = vmul.f32 %v711, %v368
        %v715 = vmul.f32 %v707, %v388
        %v716 = vmul.f32 %v708, %v392
        %v717 = vmul.f32 %v711, %v390
        %v718 = vmul.f32 %v707, %v410
        %v719 = vmul.f32 %v708, %v414
        %v720 = vmul.f32 %v711, %v412
        %v721 = vmul.f32 %v707, %v432
        %v722 = vmul.f32 %v708, %v436
        %v723 = vmul.f32 %v711, %v434
        %v724 = vmul.f32 %v707, %v454
        %v725 = vmul.f32 %v708, %v458
        %v726 = vmul.f32 %v711, %v456
        %v727 = vmul.f32 %v707, %v476
        %v728 = vmul.f32 %v708, %v480
        %v729 = vmul.f32 %v711, %v478
        %v730 = vmul.f32 %v707, %v498
        %v731 = vmul.f32 %v708, %v502
        %v732 = vmul.f32 %v711, %v500
        %736 = vrot.lane.b32.xlu0 %v712, 127
        %v737 = vpop.permute.xlu0 %736
        %738 = vrot.lane.b32.xlu0 %v713, 127
        %v739 = vpop.permute.xlu0 %738
        %740 = vrot.lane.b32.xlu0 %v714, 127
        %v741 = vpop.permute.xlu0 %740
        %v742 = vsel %vm518, %v737, %v739
        %v743 = vsel %vm518, %v739, %v741
        %749 = vrot.lane.b32.xlu0 %v715, 126
        %v750 = vpop.permute.xlu0 %749
        %751 = vrot.lane.b32.xlu0 %v716, 126
        %v752 = vpop.permute.xlu0 %751
        %753 = vrot.lane.b32.xlu0 %v717, 126
        %v754 = vpop.permute.xlu0 %753
        %v755 = vsel %vm532, %v750, %v752
        %v756 = vsel %vm532, %v752, %v754
        %762 = vrot.lane.b32.xlu0 %v718, 112
        %v763 = vpop.permute.xlu0 %762
        %764 = vrot.lane.b32.xlu0 %v719, 112
        %v765 = vpop.permute.xlu0 %764
        %766 = vrot.lane.b32.xlu0 %v720, 112
        %v767 = vpop.permute.xlu0 %766
        %v768 = vsel %vm546, %v763, %v765
        %v769 = vsel %vm546, %v765, %v767
        %775 = vrot.lane.b32.xlu0 %v707, 111
        %v776 = vpop.permute.xlu0 %775
        %777 = vrot.lane.b32.xlu0 %v708, 111
        %v778 = vpop.permute.xlu0 %777
        %779 = vrot.lane.b32.xlu0 %v711, 111
        %v780 = vpop.permute.xlu0 %779
        %v781 = vsel %vm560, %v776, %v778
        %v782 = vsel %vm560, %v778, %v780
        %788 = vrot.lane.b32.xlu0 %v721, 110
        %v789 = vpop.permute.xlu0 %788
        %790 = vrot.lane.b32.xlu0 %v722, 110
        %v791 = vpop.permute.xlu0 %790
        %792 = vrot.lane.b32.xlu0 %v723, 110
        %v793 = vpop.permute.xlu0 %792
        %v794 = vsel %vm574, %v789, %v791
        %v795 = vsel %vm574, %v791, %v793
        %801 = vrot.lane.b32.xlu0 %v724, 96
        %v802 = vpop.permute.xlu0 %801
        %803 = vrot.lane.b32.xlu0 %v725, 96
        %v804 = vpop.permute.xlu0 %803
        %805 = vrot.lane.b32.xlu0 %v726, 96
        %v806 = vpop.permute.xlu0 %805
        %v807 = vsel %vm588, %v802, %v804
        %v808 = vsel %vm588, %v804, %v806
        %814 = vrot.lane.b32.xlu0 %v727, 95
        %v815 = vpop.permute.xlu0 %814
        %816 = vrot.lane.b32.xlu0 %v728, 95
        %v817 = vpop.permute.xlu0 %816
        %818 = vrot.lane.b32.xlu0 %v729, 95
        %v819 = vpop.permute.xlu0 %818
        %v820 = vsel %vm602, %v815, %v817
        %v821 = vsel %vm602, %v817, %v819
        %827 = vrot.lane.b32.xlu0 %v730, 94
        %v828 = vpop.permute.xlu0 %827
        %829 = vrot.lane.b32.xlu0 %v731, 94
        %v830 = vpop.permute.xlu0 %829
        %831 = vrot.lane.b32.xlu0 %v732, 94
        %v832 = vpop.permute.xlu0 %831
        %v833 = vsel %vm616, %v828, %v830
        %v834 = vsel %vm616, %v830, %v832
        %v837 = vpack.c.bf16 %v742, %v709
        %v838 = vpack.c.bf16 %v743, %v710
        %v839 = vpack.c.bf16 %v768, %v755
        %v840 = vpack.c.bf16 %v769, %v756
        %v841 = vpack.c.bf16 %v794, %v781
        %v842 = vpack.c.bf16 %v795, %v782
        %v843 = vpack.c.bf16 %v820, %v807
        %v844 = vpack.c.bf16 %v821, %v808
        %v845 = vpack.c.bf16 0.0, %v833
        %v846 = vpack.c.bf16 0.0, %v834
        %v857 = vunpack.c.l.b16 %v837
        %v858 = vunpack.c.l.b16 %v838
        %v859 = vunpack.c.h.b16 %v837
        %v860 = vunpack.c.h.b16 %v838
        %v861 = vunpack.c.l.b16 %v839
        %v862 = vunpack.c.l.b16 %v840
        %v863 = vunpack.c.h.b16 %v839
        %v864 = vunpack.c.h.b16 %v840
        %v865 = vunpack.c.l.b16 %v841
        %v866 = vunpack.c.l.b16 %v842
        %v867 = vunpack.c.h.b16 %v841
        %v868 = vunpack.c.h.b16 %v842
        %v869 = vunpack.c.l.b16 %v843
        %v870 = vunpack.c.l.b16 %v844
        %v871 = vunpack.c.h.b16 %v843
        %v872 = vunpack.c.h.b16 %v844
        %v873 = vunpack.c.l.b16 %v845
        %v874 = vunpack.c.l.b16 %v846
        %v875 = vunpack.c.h.b16 %v845
        %v876 = vunpack.c.h.b16 %v846
        %v877 = vpack.c.b16 %v858, %v857
        %v878 = vpack.c.b16 %v860, %v859
        %v879 = vpack.c.b16 %v862, %v861
        %v880 = vpack.c.b16 %v864, %v863
        %v881 = vpack.c.b16 %v866, %v865
        %v882 = vpack.c.b16 %v868, %v867
        %v883 = vpack.c.b16 %v870, %v869
        %v884 = vpack.c.b16 %v872, %v871
        %v885 = vpack.c.b16 %v874, %v873
        %v886 = vpack.c.b16 %v876, %v875
        %897 = vst [vmem:[#allocation3 + $0x8] sm:$0xff] %v877
        %898 = vst [vmem:[#allocation3 + $0x28] sm:$0xff] %v878
        %899 = vst [vmem:[#allocation3 + $0x48] sm:$0xff] %v879
        %900 = vst [vmem:[#allocation3 + $0x68] sm:$0xff] %v880
        %901 = vst [vmem:[#allocation3 + $0x88] sm:$0xff] %v881
        %902 = vst [vmem:[#allocation3 + $0xa8] sm:$0xff] %v882
        %903 = vst [vmem:[#allocation3 + $0xc8] sm:$0xff] %v883
        %904 = vst [vmem:[#allocation3 + $0xe8] sm:$0xff] %v884
        %905 = vst [vmem:[#allocation3 + $0x108] sm:$0xff] %v885
        %906 = vst [vmem:[#allocation3 + $0x128] sm:$0xff] %v886
        %s907 = scalar_lea.vmem %s274, 32 [#allocation4]
        %v908 = vld [vmem:[%s907] sm:$0xff]
        %v909 = vld [vmem:[%s907 + $0x8] sm:$0xff]
        %912 = vrot.lane.b32.xlu0 %v908, 17
        %v913 = vpop.permute.xlu0 %912
        %914 = vrot.lane.b32.xlu0 %v909, 17
        %v915 = vpop.permute.xlu0 %914
        %v916 = vsel %vm322, %v913, %v915
        %920 = vst.msk [vmem:[#allocation2] sm:$0xff] %vm338, %v913
        %921 = vst [vmem:[#allocation2 + $0x8] sm:$0xff] %v916
        %922 = vst.msk [vmem:[#allocation2 + $0x10] sm:$0xff] %vm322, %v915
        %v923 = vld [vmem:[#allocation2] sm:$0xff]
        %v924 = vld [vmem:[#allocation2 + $0x8] sm:$0xff]
        %v925 = vmul.f32 %v923, %v347
        %v926 = vmul.f32 %v924, %v351
        %v927 = vld [vmem:[#allocation2 + $0x10] sm:$0xff]
        %v928 = vmul.f32 %v923, %v366
        %v929 = vmul.f32 %v924, %v370
        %v930 = vmul.f32 %v927, %v368
        %v931 = vmul.f32 %v923, %v388
        %v932 = vmul.f32 %v924, %v392
        %v933 = vmul.f32 %v927, %v390
        %v934 = vmul.f32 %v923, %v410
        %v935 = vmul.f32 %v924, %v414
        %v936 = vmul.f32 %v927, %v412
        %v937 = vmul.f32 %v923, %v432
        %v938 = vmul.f32 %v924, %v436
        %v939 = vmul.f32 %v927, %v434
        %v940 = vmul.f32 %v923, %v454
        %v941 = vmul.f32 %v924, %v458
        %v942 = vmul.f32 %v927, %v456
        %v943 = vmul.f32 %v923, %v476
        %v944 = vmul.f32 %v924, %v480
        %v945 = vmul.f32 %v927, %v478
        %v946 = vmul.f32 %v923, %v498
        %v947 = vmul.f32 %v924, %v502
        %v948 = vmul.f32 %v927, %v500
        %952 = vrot.lane.b32.xlu0 %v928, 127
        %v953 = vpop.permute.xlu0 %952
        %954 = vrot.lane.b32.xlu0 %v929, 127
        %v955 = vpop.permute.xlu0 %954
        %956 = vrot.lane.b32.xlu0 %v930, 127
        %v957 = vpop.permute.xlu0 %956
        %v958 = vsel %vm518, %v953, %v955
        %v959 = vsel %vm518, %v955, %v957
        %965 = vrot.lane.b32.xlu0 %v931, 126
        %v966 = vpop.permute.xlu0 %965
        %967 = vrot.lane.b32.xlu0 %v932, 126
        %v968 = vpop.permute.xlu0 %967
        %969 = vrot.lane.b32.xlu0 %v933, 126
        %v970 = vpop.permute.xlu0 %969
        %v971 = vsel %vm532, %v966, %v968
        %v972 = vsel %vm532, %v968, %v970
        %978 = vrot.lane.b32.xlu0 %v934, 112
        %v979 = vpop.permute.xlu0 %978
        %980 = vrot.lane.b32.xlu0 %v935, 112
        %v981 = vpop.permute.xlu0 %980
        %982 = vrot.lane.b32.xlu0 %v936, 112
        %v983 = vpop.permute.xlu0 %982
        %v984 = vsel %vm546, %v979, %v981
        %v985 = vsel %vm546, %v981, %v983
        %991 = vrot.lane.b32.xlu0 %v923, 111
        %v992 = vpop.permute.xlu0 %991
        %993 = vrot.lane.b32.xlu0 %v924, 111
        %v994 = vpop.permute.xlu0 %993
        %995 = vrot.lane.b32.xlu0 %v927, 111
        %v996 = vpop.permute.xlu0 %995
        %v997 = vsel %vm560, %v992, %v994
        %v998 = vsel %vm560, %v994, %v996
        %1004 = vrot.lane.b32.xlu0 %v937, 110
        %v1005 = vpop.permute.xlu0 %1004
        %1006 = vrot.lane.b32.xlu0 %v938, 110
        %v1007 = vpop.permute.xlu0 %1006
        %1008 = vrot.lane.b32.xlu0 %v939, 110
        %v1009 = vpop.permute.xlu0 %1008
        %v1010 = vsel %vm574, %v1005, %v1007
        %v1011 = vsel %vm574, %v1007, %v1009
        %1017 = vrot.lane.b32.xlu0 %v940, 96
        %v1018 = vpop.permute.xlu0 %1017
        %1019 = vrot.lane.b32.xlu0 %v941, 96
        %v1020 = vpop.permute.xlu0 %1019
        %1021 = vrot.lane.b32.xlu0 %v942, 96
        %v1022 = vpop.permute.xlu0 %1021
        %v1023 = vsel %vm588, %v1018, %v1020
        %v1024 = vsel %vm588, %v1020, %v1022
        %1030 = vrot.lane.b32.xlu0 %v943, 95
        %v1031 = vpop.permute.xlu0 %1030
        %1032 = vrot.lane.b32.xlu0 %v944, 95
        %v1033 = vpop.permute.xlu0 %1032
        %1034 = vrot.lane.b32.xlu0 %v945, 95
        %v1035 = vpop.permute.xlu0 %1034
        %v1036 = vsel %vm602, %v1031, %v1033
        %v1037 = vsel %vm602, %v1033, %v1035
        %1043 = vrot.lane.b32.xlu0 %v946, 94
        %v1044 = vpop.permute.xlu0 %1043
        %1045 = vrot.lane.b32.xlu0 %v947, 94
        %v1046 = vpop.permute.xlu0 %1045
        %1047 = vrot.lane.b32.xlu0 %v948, 94
        %v1048 = vpop.permute.xlu0 %1047
        %v1049 = vsel %vm616, %v1044, %v1046
        %v1050 = vsel %vm616, %v1046, %v1048
        %v1053 = vpack.c.bf16 %v958, %v925
        %v1054 = vpack.c.bf16 %v959, %v926
        %v1055 = vpack.c.bf16 %v984, %v971
        %v1056 = vpack.c.bf16 %v985, %v972
        %v1057 = vpack.c.bf16 %v1010, %v997
        %v1058 = vpack.c.bf16 %v1011, %v998
        %v1059 = vpack.c.bf16 %v1036, %v1023
        %v1060 = vpack.c.bf16 %v1037, %v1024
        %v1061 = vpack.c.bf16 0.0, %v1049
        %v1062 = vpack.c.bf16 0.0, %v1050
        %v1073 = vunpack.c.l.b16 %v1053
        %v1074 = vunpack.c.l.b16 %v1054
        %v1075 = vunpack.c.h.b16 %v1053
        %v1076 = vunpack.c.h.b16 %v1054
        %v1077 = vunpack.c.l.b16 %v1055
        %v1078 = vunpack.c.l.b16 %v1056
        %v1079 = vunpack.c.h.b16 %v1055
        %v1080 = vunpack.c.h.b16 %v1056
        %v1081 = vunpack.c.l.b16 %v1057
        %v1082 = vunpack.c.l.b16 %v1058
        %v1083 = vunpack.c.h.b16 %v1057
        %v1084 = vunpack.c.h.b16 %v1058
        %v1085 = vunpack.c.l.b16 %v1059
        %v1086 = vunpack.c.l.b16 %v1060
        %v1087 = vunpack.c.h.b16 %v1059
        %v1088 = vunpack.c.h.b16 %v1060
        %v1089 = vunpack.c.l.b16 %v1061
        %v1090 = vunpack.c.l.b16 %v1062
        %v1091 = vunpack.c.h.b16 %v1061
        %v1092 = vunpack.c.h.b16 %v1062
        %v1093 = vpack.c.b16 %v1074, %v1073
        %v1094 = vpack.c.b16 %v1076, %v1075
        %v1095 = vpack.c.b16 %v1078, %v1077
        %v1096 = vpack.c.b16 %v1080, %v1079
        %v1097 = vpack.c.b16 %v1082, %v1081
        %v1098 = vpack.c.b16 %v1084, %v1083
        %v1099 = vpack.c.b16 %v1086, %v1085
        %v1100 = vpack.c.b16 %v1088, %v1087
        %v1101 = vpack.c.b16 %v1090, %v1089
        %v1102 = vpack.c.b16 %v1092, %v1091
        %1113 = vst [vmem:[#allocation3 + $0x10] sm:$0xff] %v1093
        %1114 = vst [vmem:[#allocation3 + $0x30] sm:$0xff] %v1094
        %1115 = vst [vmem:[#allocation3 + $0x50] sm:$0xff] %v1095
        %1116 = vst [vmem:[#allocation3 + $0x70] sm:$0xff] %v1096
        %1117 = vst [vmem:[#allocation3 + $0x90] sm:$0xff] %v1097
        %1118 = vst [vmem:[#allocation3 + $0xb0] sm:$0xff] %v1098
        %1119 = vst [vmem:[#allocation3 + $0xd0] sm:$0xff] %v1099
        %1120 = vst [vmem:[#allocation3 + $0xf0] sm:$0xff] %v1100
        %1121 = vst [vmem:[#allocation3 + $0x110] sm:$0xff] %v1101
        %1122 = vst [vmem:[#allocation3 + $0x130] sm:$0xff] %v1102
        %s1123 = scalar_lea.vmem %s274, 48 [#allocation4]
        %v1124 = vld [vmem:[%s1123] sm:$0xff]
        %v1125 = vld [vmem:[%s1123 + $0x8] sm:$0xff]
        %1128 = vrot.lane.b32.xlu0 %v1124, 17
        %v1129 = vpop.permute.xlu0 %1128
        %1130 = vrot.lane.b32.xlu0 %v1125, 17
        %v1131 = vpop.permute.xlu0 %1130
        %v1132 = vsel %vm322, %v1129, %v1131
        %1136 = vst.msk [vmem:[#allocation2] sm:$0xff] %vm338, %v1129
        %1137 = vst [vmem:[#allocation2 + $0x8] sm:$0xff] %v1132
        %1138 = vst.msk [vmem:[#allocation2 + $0x10] sm:$0xff] %vm322, %v1131
        %v1139 = vld [vmem:[#allocation2] sm:$0xff]
        %v1140 = vld [vmem:[#allocation2 + $0x8] sm:$0xff]
        %v1141 = vmul.f32 %v1139, %v347
        %v1142 = vmul.f32 %v1140, %v351
        %v1143 = vld [vmem:[#allocation2 + $0x10] sm:$0xff]
        %v1144 = vmul.f32 %v1139, %v366
        %v1145 = vmul.f32 %v1140, %v370
        %v1146 = vmul.f32 %v1143, %v368
        %v1147 = vmul.f32 %v1139, %v388
        %v1148 = vmul.f32 %v1140, %v392
        %v1149 = vmul.f32 %v1143, %v390
        %v1150 = vmul.f32 %v1139, %v410
        %v1151 = vmul.f32 %v1140, %v414
        %v1152 = vmul.f32 %v1143, %v412
        %v1153 = vmul.f32 %v1139, %v432
        %v1154 = vmul.f32 %v1140, %v436
        %v1155 = vmul.f32 %v1143, %v434
        %v1156 = vmul.f32 %v1139, %v454
        %v1157 = vmul.f32 %v1140, %v458
        %v1158 = vmul.f32 %v1143, %v456
        %v1159 = vmul.f32 %v1139, %v476
        %v1160 = vmul.f32 %v1140, %v480
        %v1161 = vmul.f32 %v1143, %v478
        %v1162 = vmul.f32 %v1139, %v498
        %v1163 = vmul.f32 %v1140, %v502
        %v1164 = vmul.f32 %v1143, %v500
        %1168 = vrot.lane.b32.xlu0 %v1144, 127
        %v1169 = vpop.permute.xlu0 %1168
        %1170 = vrot.lane.b32.xlu0 %v1145, 127
        %v1171 = vpop.permute.xlu0 %1170
        %1172 = vrot.lane.b32.xlu0 %v1146, 127
        %v1173 = vpop.permute.xlu0 %1172
        %v1174 = vsel %vm518, %v1169, %v1171
        %v1175 = vsel %vm518, %v1171, %v1173
        %1181 = vrot.lane.b32.xlu0 %v1147, 126
        %v1182 = vpop.permute.xlu0 %1181
        %1183 = vrot.lane.b32.xlu0 %v1148, 126
        %v1184 = vpop.permute.xlu0 %1183
        %1185 = vrot.lane.b32.xlu0 %v1149, 126
        %v1186 = vpop.permute.xlu0 %1185
        %v1187 = vsel %vm532, %v1182, %v1184
        %v1188 = vsel %vm532, %v1184, %v1186
        %1194 = vrot.lane.b32.xlu0 %v1150, 112
        %v1195 = vpop.permute.xlu0 %1194
        %1196 = vrot.lane.b32.xlu0 %v1151, 112
        %v1197 = vpop.permute.xlu0 %1196
        %1198 = vrot.lane.b32.xlu0 %v1152, 112
        %v1199 = vpop.permute.xlu0 %1198
        %v1200 = vsel %vm546, %v1195, %v1197
        %v1201 = vsel %vm546, %v1197, %v1199
        %1207 = vrot.lane.b32.xlu0 %v1139, 111
        %v1208 = vpop.permute.xlu0 %1207
        %1209 = vrot.lane.b32.xlu0 %v1140, 111
        %v1210 = vpop.permute.xlu0 %1209
        %1211 = vrot.lane.b32.xlu0 %v1143, 111
        %v1212 = vpop.permute.xlu0 %1211
        %v1213 = vsel %vm560, %v1208, %v1210
        %v1214 = vsel %vm560, %v1210, %v1212
        %1220 = vrot.lane.b32.xlu0 %v1153, 110
        %v1221 = vpop.permute.xlu0 %1220
        %1222 = vrot.lane.b32.xlu0 %v1154, 110
        %v1223 = vpop.permute.xlu0 %1222
        %1224 = vrot.lane.b32.xlu0 %v1155, 110
        %v1225 = vpop.permute.xlu0 %1224
        %v1226 = vsel %vm574, %v1221, %v1223
        %v1227 = vsel %vm574, %v1223, %v1225
        %1233 = vrot.lane.b32.xlu0 %v1156, 96
        %v1234 = vpop.permute.xlu0 %1233
        %1235 = vrot.lane.b32.xlu0 %v1157, 96
        %v1236 = vpop.permute.xlu0 %1235
        %1237 = vrot.lane.b32.xlu0 %v1158, 96
        %v1238 = vpop.permute.xlu0 %1237
        %v1239 = vsel %vm588, %v1234, %v1236
        %v1240 = vsel %vm588, %v1236, %v1238
        %1246 = vrot.lane.b32.xlu0 %v1159, 95
        %v1247 = vpop.permute.xlu0 %1246
        %1248 = vrot.lane.b32.xlu0 %v1160, 95
        %v1249 = vpop.permute.xlu0 %1248
        %1250 = vrot.lane.b32.xlu0 %v1161, 95
        %v1251 = vpop.permute.xlu0 %1250
        %v1252 = vsel %vm602, %v1247, %v1249
        %v1253 = vsel %vm602, %v1249, %v1251
        %1259 = vrot.lane.b32.xlu0 %v1162, 94
        %v1260 = vpop.permute.xlu0 %1259
        %1261 = vrot.lane.b32.xlu0 %v1163, 94
        %v1262 = vpop.permute.xlu0 %1261
        %1263 = vrot.lane.b32.xlu0 %v1164, 94
        %v1264 = vpop.permute.xlu0 %1263
        %v1265 = vsel %vm616, %v1260, %v1262
        %v1266 = vsel %vm616, %v1262, %v1264
        %v1269 = vpack.c.bf16 %v1174, %v1141
        %v1270 = vpack.c.bf16 %v1175, %v1142
        %v1271 = vpack.c.bf16 %v1200, %v1187
        %v1272 = vpack.c.bf16 %v1201, %v1188
        %v1273 = vpack.c.bf16 %v1226, %v1213
        %v1274 = vpack.c.bf16 %v1227, %v1214
        %v1275 = vpack.c.bf16 %v1252, %v1239
        %v1276 = vpack.c.bf16 %v1253, %v1240
        %v1277 = vpack.c.bf16 0.0, %v1265
        %v1278 = vpack.c.bf16 0.0, %v1266
        %v1289 = vunpack.c.l.b16 %v1269
        %v1290 = vunpack.c.l.b16 %v1270
        %v1291 = vunpack.c.h.b16 %v1269
        %v1292 = vunpack.c.h.b16 %v1270
        %v1293 = vunpack.c.l.b16 %v1271
        %v1294 = vunpack.c.l.b16 %v1272
        %v1295 = vunpack.c.h.b16 %v1271
        %v1296 = vunpack.c.h.b16 %v1272
        %v1297 = vunpack.c.l.b16 %v1273
        %v1298 = vunpack.c.l.b16 %v1274
        %v1299 = vunpack.c.h.b16 %v1273
        %v1300 = vunpack.c.h.b16 %v1274
        %v1301 = vunpack.c.l.b16 %v1275
        %v1302 = vunpack.c.l.b16 %v1276
        %v1303 = vunpack.c.h.b16 %v1275
        %v1304 = vunpack.c.h.b16 %v1276
        %v1305 = vunpack.c.l.b16 %v1277
        %v1306 = vunpack.c.l.b16 %v1278
        %v1307 = vunpack.c.h.b16 %v1277
        %v1308 = vunpack.c.h.b16 %v1278
        %v1309 = vpack.c.b16 %v1290, %v1289
        %v1310 = vpack.c.b16 %v1292, %v1291
        %v1311 = vpack.c.b16 %v1294, %v1293
        %v1312 = vpack.c.b16 %v1296, %v1295
        %v1313 = vpack.c.b16 %v1298, %v1297
        %v1314 = vpack.c.b16 %v1300, %v1299
        %v1315 = vpack.c.b16 %v1302, %v1301
        %v1316 = vpack.c.b16 %v1304, %v1303
        %v1317 = vpack.c.b16 %v1306, %v1305
        %v1318 = vpack.c.b16 %v1308, %v1307
        %1329 = vst [vmem:[#allocation3 + $0x18] sm:$0xff] %v1309
        %1330 = vst [vmem:[#allocation3 + $0x38] sm:$0xff] %v1310
        %1331 = vst [vmem:[#allocation3 + $0x58] sm:$0xff] %v1311
        %1332 = vst [vmem:[#allocation3 + $0x78] sm:$0xff] %v1312
        %1333 = vst [vmem:[#allocation3 + $0x98] sm:$0xff] %v1313
        %1334 = vst [vmem:[#allocation3 + $0xb8] sm:$0xff] %v1314
        %1335 = vst [vmem:[#allocation3 + $0xd8] sm:$0xff] %v1315
        %1336 = vst [vmem:[#allocation3 + $0xf8] sm:$0xff] %v1316
        %1337 = vst [vmem:[#allocation3 + $0x118] sm:$0xff] %v1317
        %1338 = vst [vmem:[#allocation3 + $0x138] sm:$0xff] %v1318
        %v1339 = vld [vmem:[#allocation9] sm:$0xf]
        %v1340 = vld [vmem:[#allocation9 + $0x4] sm:$0xf]
        %v1341 = vld [vmem:[#allocation9 + $0x8] sm:$0xf]
        %v1342 = vld [vmem:[#allocation9 + $0xc] sm:$0xf]
        %v1343 = vld [vmem:[#allocation3] sm:$0xff]
        %v1344 = vld [vmem:[#allocation3 + $0x8] sm:$0xff]
        %v1345 = vld [vmem:[#allocation3 + $0x10] sm:$0xff]
        %v1346 = vld [vmem:[#allocation3 + $0x18] sm:$0xff]
        %v1347 = vld [vmem:[#allocation3 + $0x20] sm:$0xff]
        %v1348 = vld [vmem:[#allocation3 + $0x28] sm:$0xff]
        %v1349 = vld [vmem:[#allocation3 + $0x30] sm:$0xff]
        %v1350 = vld [vmem:[#allocation3 + $0x38] sm:$0xff]
        %v1351 = vld [vmem:[#allocation3 + $0x40] sm:$0xff]
        %v1352 = vld [vmem:[#allocation3 + $0x48] sm:$0xff]
        %v1353 = vld [vmem:[#allocation3 + $0x50] sm:$0xff]
        %v1354 = vld [vmem:[#allocation3 + $0x58] sm:$0xff]
        %v1355 = vld [vmem:[#allocation3 + $0x60] sm:$0xff]
        %v1356 = vld [vmem:[#allocation3 + $0x68] sm:$0xff]
        %v1357 = vld [vmem:[#allocation3 + $0x70] sm:$0xff]
        %v1358 = vld [vmem:[#allocation3 + $0x78] sm:$0xff]
        %v1359 = vld [vmem:[#allocation3 + $0x80] sm:$0xff]
        %v1360 = vld [vmem:[#allocation3 + $0x88] sm:$0xff]
        %v1361 = vld [vmem:[#allocation3 + $0x90] sm:$0xff]
        %v1362 = vld [vmem:[#allocation3 + $0x98] sm:$0xff]
        %v1363 = vld [vmem:[#allocation3 + $0xa0] sm:$0xff]
        %v1364 = vld [vmem:[#allocation3 + $0xa8] sm:$0xff]
        %v1365 = vld [vmem:[#allocation3 + $0xb0] sm:$0xff]
        %v1366 = vld [vmem:[#allocation3 + $0xb8] sm:$0xff]
        %v1367 = vld [vmem:[#allocation3 + $0xc0] sm:$0xff]
        %v1368 = vld [vmem:[#allocation3 + $0xc8] sm:$0xff]
        %v1369 = vld [vmem:[#allocation3 + $0xd0] sm:$0xff]
        %v1370 = vld [vmem:[#allocation3 + $0xd8] sm:$0xff]
        %v1371 = vld [vmem:[#allocation3 + $0xe0] sm:$0xff]
        %v1372 = vld [vmem:[#allocation3 + $0xe8] sm:$0xff]
        %v1373 = vld [vmem:[#allocation3 + $0xf0] sm:$0xff]
        %v1374 = vld [vmem:[#allocation3 + $0xf8] sm:$0xff]
        %v1375 = vld [vmem:[#allocation3 + $0x100] sm:$0xff]
        %v1376 = vld [vmem:[#allocation3 + $0x108] sm:$0xff]
        %v1377 = vld [vmem:[#allocation3 + $0x110] sm:$0xff]
        %v1378 = vld [vmem:[#allocation3 + $0x118] sm:$0xff]
        %v1379 = vld [vmem:[#allocation3 + $0x120] sm:$0xff]
        %v1380 = vld [vmem:[#allocation3 + $0x128] sm:$0xff]
        %v1381 = vld [vmem:[#allocation3 + $0x130] sm:$0xff]
        %v1382 = vld [vmem:[#allocation3 + $0x138] sm:$0xff]
        %v1387 = vunpack.c.l.b16 %v1339
        %v1388 = vunpack.c.l.b16 %v1340
        %v1389 = vunpack.c.l.b16 %v1341
        %v1390 = vunpack.c.l.b16 %v1342
        %v1391 = vpack.c.b16 %v1388, %v1387
        %v1392 = vpack.c.b16 %v1390, %v1389
        %v1433 = vunpack.c.l.b16 %v1343
        %v1434 = vunpack.c.h.b16 %v1343
        %v1435 = vunpack.c.l.b16 %v1344
        %v1436 = vunpack.c.h.b16 %v1344
        %v1437 = vunpack.c.l.b16 %v1345
        %v1438 = vunpack.c.h.b16 %v1345
        %v1439 = vunpack.c.l.b16 %v1346
        %v1440 = vunpack.c.h.b16 %v1346
        %v1441 = vunpack.c.l.b16 %v1347
        %v1442 = vunpack.c.h.b16 %v1347
        %v1443 = vunpack.c.l.b16 %v1348
        %v1444 = vunpack.c.h.b16 %v1348
        %v1445 = vunpack.c.l.b16 %v1349
        %v1446 = vunpack.c.h.b16 %v1349
        %v1447 = vunpack.c.l.b16 %v1350
        %v1448 = vunpack.c.h.b16 %v1350
        %v1449 = vunpack.c.l.b16 %v1351
        %v1450 = vunpack.c.h.b16 %v1351
        %v1451 = vunpack.c.l.b16 %v1352
        %v1452 = vunpack.c.h.b16 %v1352
        %v1453 = vunpack.c.l.b16 %v1353
        %v1454 = vunpack.c.h.b16 %v1353
        %v1455 = vunpack.c.l.b16 %v1354
        %v1456 = vunpack.c.h.b16 %v1354
        %v1457 = vunpack.c.l.b16 %v1355
        %v1458 = vunpack.c.h.b16 %v1355
        %v1459 = vunpack.c.l.b16 %v1356
        %v1460 = vunpack.c.h.b16 %v1356
        %v1461 = vunpack.c.l.b16 %v1357
        %v1462 = vunpack.c.h.b16 %v1357
        %v1463 = vunpack.c.l.b16 %v1358
        %v1464 = vunpack.c.h.b16 %v1358
        %v1465 = vunpack.c.l.b16 %v1359
        %v1466 = vunpack.c.h.b16 %v1359
        %v1467 = vunpack.c.l.b16 %v1360
        %v1468 = vunpack.c.h.b16 %v1360
        %v1469 = vunpack.c.l.b16 %v1361
        %v1470 = vunpack.c.h.b16 %v1361
        %v1471 = vunpack.c.l.b16 %v1362
        %v1472 = vunpack.c.h.b16 %v1362
        %v1473 = vunpack.c.l.b16 %v1363
        %v1474 = vunpack.c.h.b16 %v1363
        %v1475 = vunpack.c.l.b16 %v1364
        %v1476 = vunpack.c.h.b16 %v1364
        %v1477 = vunpack.c.l.b16 %v1365
        %v1478 = vunpack.c.h.b16 %v1365
        %v1479 = vunpack.c.l.b16 %v1366
        %v1480 = vunpack.c.h.b16 %v1366
        %v1481 = vunpack.c.l.b16 %v1367
        %v1482 = vunpack.c.h.b16 %v1367
        %v1483 = vunpack.c.l.b16 %v1368
        %v1484 = vunpack.c.h.b16 %v1368
        %v1485 = vunpack.c.l.b16 %v1369
        %v1486 = vunpack.c.h.b16 %v1369
        %v1487 = vunpack.c.l.b16 %v1370
        %v1488 = vunpack.c.h.b16 %v1370
        %v1489 = vunpack.c.l.b16 %v1371
        %v1490 = vunpack.c.h.b16 %v1371
        %v1491 = vunpack.c.l.b16 %v1372
        %v1492 = vunpack.c.h.b16 %v1372
        %v1493 = vunpack.c.l.b16 %v1373
        %v1494 = vunpack.c.h.b16 %v1373
        %v1495 = vunpack.c.l.b16 %v1374
        %v1496 = vunpack.c.h.b16 %v1374
        %v1497 = vunpack.c.l.b16 %v1375
        %v1498 = vunpack.c.h.b16 %v1375
        %v1499 = vunpack.c.l.b16 %v1376
        %v1500 = vunpack.c.h.b16 %v1376
        %v1501 = vunpack.c.l.b16 %v1377
        %v1502 = vunpack.c.h.b16 %v1377
        %v1503 = vunpack.c.l.b16 %v1378
        %v1504 = vunpack.c.h.b16 %v1378
        %v1505 = vunpack.c.l.b16 %v1379
        %v1506 = vunpack.c.h.b16 %v1379
        %v1507 = vunpack.c.l.b16 %v1380
        %v1508 = vunpack.c.h.b16 %v1380
        %v1509 = vunpack.c.l.b16 %v1381
        %v1510 = vunpack.c.h.b16 %v1381
        %v1511 = vunpack.c.l.b16 %v1382
        %v1512 = vunpack.c.h.b16 %v1382
        %v1513 = vpack.c.b16 %v1441, %v1433
        %v1514 = vpack.c.b16 %v1442, %v1434
        %v1515 = vpack.c.b16 %v1443, %v1435
        %v1516 = vpack.c.b16 %v1444, %v1436
        %v1517 = vpack.c.b16 %v1445, %v1437
        %v1518 = vpack.c.b16 %v1446, %v1438
        %v1519 = vpack.c.b16 %v1447, %v1439
        %v1520 = vpack.c.b16 %v1448, %v1440
        %v1521 = vpack.c.b16 %v1457, %v1449
        %v1522 = vpack.c.b16 %v1458, %v1450
        %v1523 = vpack.c.b16 %v1459, %v1451
        %v1524 = vpack.c.b16 %v1460, %v1452
        %v1525 = vpack.c.b16 %v1461, %v1453
        %v1526 = vpack.c.b16 %v1462, %v1454
        %v1527 = vpack.c.b16 %v1463, %v1455
        %v1528 = vpack.c.b16 %v1464, %v1456
        %v1529 = vpack.c.b16 %v1473, %v1465
        %v1530 = vpack.c.b16 %v1474, %v1466
        %v1531 = vpack.c.b16 %v1475, %v1467
        %v1532 = vpack.c.b16 %v1476, %v1468
        %v1533 = vpack.c.b16 %v1477, %v1469
        %v1534 = vpack.c.b16 %v1478, %v1470
        %v1535 = vpack.c.b16 %v1479, %v1471
        %v1536 = vpack.c.b16 %v1480, %v1472
        %v1537 = vpack.c.b16 %v1489, %v1481
        %v1538 = vpack.c.b16 %v1490, %v1482
        %v1539 = vpack.c.b16 %v1491, %v1483
        %v1540 = vpack.c.b16 %v1492, %v1484
        %v1541 = vpack.c.b16 %v1493, %v1485
        %v1542 = vpack.c.b16 %v1494, %v1486
        %v1543 = vpack.c.b16 %v1495, %v1487
        %v1544 = vpack.c.b16 %v1496, %v1488
        %v1545 = vpack.c.b16 %v1505, %v1497
        %v1546 = vpack.c.b16 %v1506, %v1498
        %v1547 = vpack.c.b16 %v1507, %v1499
        %v1548 = vpack.c.b16 %v1508, %v1500
        %v1549 = vpack.c.b16 %v1509, %v1501
        %v1550 = vpack.c.b16 %v1510, %v1502
        %v1551 = vpack.c.b16 %v1511, %v1503
        %v1552 = vpack.c.b16 %v1512, %v1504
        %vm1593 = vcmask 654336
        %v1595 = vsel %vm1593, %v1391, 0
        %v1598 = vsel %vm1593, %v1392, 0
        %1600 = vmatprep.subr.bf16.mxu0 0
        %1601 = vmatpush1.bf16.msra.mxu0 0
        %1602 = vmatprep.subr.bf16.mxu0 0
        %1603 = vmatpush1.bf16.msra.mxu0 0
        %1604 = vmatprep.subr.bf16.mxu0 0
        %1605 = vmatpush1.bf16.msra.mxu0 0
        %1606 = vmatprep.subr.bf16.mxu0 %v1546
        %1607 = vmatpush1.bf16.msra.mxu0 %v1545
        %1608 = vmatprep.subr.bf16.mxu0 %v1538
        %1609 = vmatpush1.bf16.msra.mxu0 %v1537
        %1610 = vmatprep.subr.bf16.mxu0 %v1530
        %1611 = vmatpush1.bf16.msra.mxu0 %v1529
        %1612 = vmatprep.subr.bf16.mxu0 %v1522
        %1613 = vmatpush1.bf16.msra.mxu0 %v1521
        %1614 = vmatprep.subr.bf16.mxu0 %v1514
        %1615 = vmatpush1.bf16.msra.mxu0 %v1513
        %1616 = vmatprep.subr.bf16.mxu0 0
        %1617 = vmatpush2.bf16.msra.mxu0 0
        %1618 = vmatprep.subr.bf16.mxu0 0
        %1619 = vmatpush2.bf16.msra.mxu0 0
        %1620 = vmatprep.subr.bf16.mxu0 0
        %1621 = vmatpush2.bf16.msra.mxu0 0
        %1622 = vmatprep.subr.bf16.mxu0 0
        %1623 = vmatpush2.bf16.msra.mxu0 0
        %1624 = vmatprep.subr.bf16.mxu0 0
        %1625 = vmatpush2.bf16.msra.mxu0 0
        %1626 = vmatprep.subr.bf16.mxu0 0
        %1627 = vmatpush2.bf16.msra.mxu0 0
        %1628 = vmatprep.subr.bf16.mxu0 0
        %1629 = vmatpush2.bf16.msra.mxu0 0
        %1630 = vmatprep.subr.bf16.mxu0 0
        %1631 = vmatpush2.bf16.msra.mxu0 0
        %1632 = vmatprep.mubr.bf16.mxu0 0
        %1633 = vmatmul.mubr.bf16.gmra.mxu0 %v1595
        %v1634 = vpop.f32.mrf.mxu0
        %v1635 = vadd.f32 0.0, %v1634
        %v1636 = vpop.f32.mrf.mxu0
        %v1637 = vadd.f32 0.0, %v1636
        %v1638 = vpop.f32.mrf.mxu0
        %v1639 = vadd.f32 0.0, %v1638
        %v1640 = vpop.f32.mrf.mxu0
        %v1641 = vadd.f32 0.0, %v1640
        %1642 = vmatprep.mubr.bf16.mxu0 0
        %1643 = vmatmul.mubr.bf16.gmra.mxu0 %v1598
        %v1644 = vpop.f32.mrf.mxu0
        %v1645 = vadd.f32 0.0, %v1644
        %v1646 = vpop.f32.mrf.mxu0
        %v1647 = vadd.f32 0.0, %v1646
        %v1648 = vpop.f32.mrf.mxu0
        %v1649 = vadd.f32 0.0, %v1648
        %v1650 = vpop.f32.mrf.mxu0
        %v1651 = vadd.f32 0.0, %v1650
        %1652 = vdwg.mxu0
        %1653 = vmatprep.subr.bf16.mxu0 0
        %1654 = vmatpush1.bf16.msra.mxu0 0
        %1655 = vmatprep.subr.bf16.mxu0 0
        %1656 = vmatpush1.bf16.msra.mxu0 0
        %1657 = vmatprep.subr.bf16.mxu0 0
        %1658 = vmatpush1.bf16.msra.mxu0 0
        %1659 = vmatprep.subr.bf16.mxu0 %v1548
        %1660 = vmatpush1.bf16.msra.mxu0 %v1547
        %1661 = vmatprep.subr.bf16.mxu0 %v1540
        %1662 = vmatpush1.bf16.msra.mxu0 %v1539
        %1663 = vmatprep.subr.bf16.mxu0 %v1532
        %1664 = vmatpush1.bf16.msra.mxu0 %v1531
        %1665 = vmatprep.subr.bf16.mxu0 %v1524
        %1666 = vmatpush1.bf16.msra.mxu0 %v1523
        %1667 = vmatprep.subr.bf16.mxu0 %v1516
        %1668 = vmatpush1.bf16.msra.mxu0 %v1515
        %1669 = vmatprep.subr.bf16.mxu0 0
        %1670 = vmatpush2.bf16.msra.mxu0 0
        %1671 = vmatprep.subr.bf16.mxu0 0
        %1672 = vmatpush2.bf16.msra.mxu0 0
        %1673 = vmatprep.subr.bf16.mxu0 0
        %1674 = vmatpush2.bf16.msra.mxu0 0
        %1675 = vmatprep.subr.bf16.mxu0 0
        %1676 = vmatpush2.bf16.msra.mxu0 0
        %1677 = vmatprep.subr.bf16.mxu0 0
        %1678 = vmatpush2.bf16.msra.mxu0 0
        %1679 = vmatprep.subr.bf16.mxu0 0
        %1680 = vmatpush2.bf16.msra.mxu0 0
        %1681 = vmatprep.subr.bf16.mxu0 0
        %1682 = vmatpush2.bf16.msra.mxu0 0
        %1683 = vmatprep.subr.bf16.mxu0 0
        %1684 = vmatpush2.bf16.msra.mxu0 0
        %1685 = vmatprep.mubr.bf16.mxu0 0
        %1686 = vmatmul.mubr.bf16.gmra.mxu0 %v1595
        %v1687 = vpop.f32.mrf.mxu0
        %v1688 = vadd.f32 0.0, %v1687
        %v1689 = vpop.f32.mrf.mxu0
        %v1690 = vadd.f32 0.0, %v1689
        %v1691 = vpop.f32.mrf.mxu0
        %v1692 = vadd.f32 0.0, %v1691
        %v1693 = vpop.f32.mrf.mxu0
        %v1694 = vadd.f32 0.0, %v1693
        %1695 = vmatprep.mubr.bf16.mxu0 0
        %1696 = vmatmul.mubr.bf16.gmra.mxu0 %v1598
        %v1697 = vpop.f32.mrf.mxu0
        %v1698 = vadd.f32 0.0, %v1697
        %v1699 = vpop.f32.mrf.mxu0
        %v1700 = vadd.f32 0.0, %v1699
        %v1701 = vpop.f32.mrf.mxu0
        %v1702 = vadd.f32 0.0, %v1701
        %v1703 = vpop.f32.mrf.mxu0
        %v1704 = vadd.f32 0.0, %v1703
        %1705 = vdwg.mxu0
        %1706 = vmatprep.subr.bf16.mxu0 0
        %1707 = vmatpush1.bf16.msra.mxu0 0
        %1708 = vmatprep.subr.bf16.mxu0 0
        %1709 = vmatpush1.bf16.msra.mxu0 0
        %1710 = vmatprep.subr.bf16.mxu0 0
        %1711 = vmatpush1.bf16.msra.mxu0 0
        %1712 = vmatprep.subr.bf16.mxu0 %v1550
        %1713 = vmatpush1.bf16.msra.mxu0 %v1549
        %1714 = vmatprep.subr.bf16.mxu0 %v1542
        %1715 = vmatpush1.bf16.msra.mxu0 %v1541
        %1716 = vmatprep.subr.bf16.mxu0 %v1534
        %1717 = vmatpush1.bf16.msra.mxu0 %v1533
        %1718 = vmatprep.subr.bf16.mxu0 %v1526
        %1719 = vmatpush1.bf16.msra.mxu0 %v1525
        %1720 = vmatprep.subr.bf16.mxu0 %v1518
        %1721 = vmatpush1.bf16.msra.mxu0 %v1517
        %1722 = vmatprep.subr.bf16.mxu0 0
        %1723 = vmatpush2.bf16.msra.mxu0 0
        %1724 = vmatprep.subr.bf16.mxu0 0
        %1725 = vmatpush2.bf16.msra.mxu0 0
        %1726 = vmatprep.subr.bf16.mxu0 0
        %1727 = vmatpush2.bf16.msra.mxu0 0
        %1728 = vmatprep.subr.bf16.mxu0 0
        %1729 = vmatpush2.bf16.msra.mxu0 0
        %1730 = vmatprep.subr.bf16.mxu0 0
        %1731 = vmatpush2.bf16.msra.mxu0 0
        %1732 = vmatprep.subr.bf16.mxu0 0
        %1733 = vmatpush2.bf16.msra.mxu0 0
        %1734 = vmatprep.subr.bf16.mxu0 0
        %1735 = vmatpush2.bf16.msra.mxu0 0
        %1736 = vmatprep.subr.bf16.mxu0 0
        %1737 = vmatpush2.bf16.msra.mxu0 0
        %1738 = vmatprep.mubr.bf16.mxu0 0
        %1739 = vmatmul.mubr.bf16.gmra.mxu0 %v1595
        %v1740 = vpop.f32.mrf.mxu0
        %v1741 = vadd.f32 0.0, %v1740
        %v1742 = vpop.f32.mrf.mxu0
        %v1743 = vadd.f32 0.0, %v1742
        %v1744 = vpop.f32.mrf.mxu0
        %v1745 = vadd.f32 0.0, %v1744
        %v1746 = vpop.f32.mrf.mxu0
        %v1747 = vadd.f32 0.0, %v1746
        %1748 = vmatprep.mubr.bf16.mxu0 0
        %1749 = vmatmul.mubr.bf16.gmra.mxu0 %v1598
        %v1750 = vpop.f32.mrf.mxu0
        %v1751 = vadd.f32 0.0, %v1750
        %v1752 = vpop.f32.mrf.mxu0
        %v1753 = vadd.f32 0.0, %v1752
        %v1754 = vpop.f32.mrf.mxu0
        %v1755 = vadd.f32 0.0, %v1754
        %v1756 = vpop.f32.mrf.mxu0
        %v1757 = vadd.f32 0.0, %v1756
        %1758 = vdwg.mxu0
        %1759 = vmatprep.subr.bf16.mxu0 0
        %1760 = vmatpush1.bf16.msra.mxu0 0
        %1761 = vmatprep.subr.bf16.mxu0 0
        %1762 = vmatpush1.bf16.msra.mxu0 0
        %1763 = vmatprep.subr.bf16.mxu0 0
        %1764 = vmatpush1.bf16.msra.mxu0 0
        %1765 = vmatprep.subr.bf16.mxu0 %v1552
        %1766 = vmatpush1.bf16.msra.mxu0 %v1551
        %1767 = vmatprep.subr.bf16.mxu0 %v1544
        %1768 = vmatpush1.bf16.msra.mxu0 %v1543
        %1769 = vmatprep.subr.bf16.mxu0 %v1536
        %1770 = vmatpush1.bf16.msra.mxu0 %v1535
        %1771 = vmatprep.subr.bf16.mxu0 %v1528
        %1772 = vmatpush1.bf16.msra.mxu0 %v1527
        %1773 = vmatprep.subr.bf16.mxu0 %v1520
        %1774 = vmatpush1.bf16.msra.mxu0 %v1519
        %1775 = vmatprep.subr.bf16.mxu0 0
        %1776 = vmatpush2.bf16.msra.mxu0 0
        %1777 = vmatprep.subr.bf16.mxu0 0
        %1778 = vmatpush2.bf16.msra.mxu0 0
        %1779 = vmatprep.subr.bf16.mxu0 0
        %1780 = vmatpush2.bf16.msra.mxu0 0
        %1781 = vmatprep.subr.bf16.mxu0 0
        %1782 = vmatpush2.bf16.msra.mxu0 0
        %1783 = vmatprep.subr.bf16.mxu0 0
        %1784 = vmatpush2.bf16.msra.mxu0 0
        %1785 = vmatprep.subr.bf16.mxu0 0
        %1786 = vmatpush2.bf16.msra.mxu0 0
        %1787 = vmatprep.subr.bf16.mxu0 0
        %1788 = vmatpush2.bf16.msra.mxu0 0
        %1789 = vmatprep.subr.bf16.mxu0 0
        %1790 = vmatpush2.bf16.msra.mxu0 0
        %1791 = vmatprep.mubr.bf16.mxu0 0
        %1792 = vmatmul.mubr.bf16.gmra.mxu0 %v1595
        %v1793 = vpop.f32.mrf.mxu0
        %v1794 = vadd.f32 0.0, %v1793
        %v1795 = vpop.f32.mrf.mxu0
        %v1796 = vadd.f32 0.0, %v1795
        %v1797 = vpop.f32.mrf.mxu0
        %v1798 = vadd.f32 0.0, %v1797
        %v1799 = vpop.f32.mrf.mxu0
        %v1800 = vadd.f32 0.0, %v1799
        %1801 = vmatprep.mubr.bf16.mxu0 0
        %1802 = vmatmul.mubr.bf16.gmra.mxu0 %v1598
        %v1803 = vpop.f32.mrf.mxu0
        %v1804 = vadd.f32 0.0, %v1803
        %v1805 = vpop.f32.mrf.mxu0
        %v1806 = vadd.f32 0.0, %v1805
        %v1807 = vpop.f32.mrf.mxu0
        %v1808 = vadd.f32 0.0, %v1807
        %v1809 = vpop.f32.mrf.mxu0
        %v1810 = vadd.f32 0.0, %v1809
        %1811 = vdwg.mxu0
        %v1812 = vld [vmem:[#allocation10] sm:$0xff]
        %v1813 = vld [vmem:[#allocation10 + $0x8] sm:$0xff]
        %v1814 = vld [vmem:[#allocation10 + $0x10] sm:$0xff]
        %v1815 = vld [vmem:[#allocation10 + $0x18] sm:$0xff]
        %v1816 = vld [vmem:[#allocation10 + $0x20] sm:$0xff]
        %v1817 = vld [vmem:[#allocation10 + $0x28] sm:$0xff]
        %v1818 = vld [vmem:[#allocation10 + $0x30] sm:$0xff]
        %v1819 = vld [vmem:[#allocation10 + $0x38] sm:$0xff]
        %v1820 = vadd.f32 %v1635, %v1812
        %v1821 = vadd.f32 %v1637, %v1813
        %v1822 = vadd.f32 %v1639, %v1814
        %v1823 = vadd.f32 %v1641, %v1815
        %v1824 = vadd.f32 %v1645, %v1816
        %v1825 = vadd.f32 %v1647, %v1817
        %v1826 = vadd.f32 %v1649, %v1818
        %v1827 = vadd.f32 %v1651, %v1819
        %v1828 = vmax.f32 %v1820, 0.0
        %v1829 = vmax.f32 %v1821, 0.0
        %v1830 = vmax.f32 %v1822, 0.0
        %v1831 = vmax.f32 %v1823, 0.0
        %v1832 = vmax.f32 %v1824, 0.0
        %v1833 = vmax.f32 %v1825, 0.0
        %v1834 = vmax.f32 %v1826, 0.0
        %v1835 = vmax.f32 %v1827, 0.0
        %v1836 = vpack.c.bf16 %v1830, %v1828
        %v1837 = vpack.c.bf16 %v1831, %v1829
        %v1838 = vpack.c.bf16 %v1834, %v1832
        %v1839 = vpack.c.bf16 %v1835, %v1833
        %v1840 = vadd.f32 %v1688, %v1812
        %v1841 = vadd.f32 %v1690, %v1813
        %v1842 = vadd.f32 %v1692, %v1814
        %v1843 = vadd.f32 %v1694, %v1815
        %v1844 = vadd.f32 %v1698, %v1816
        %v1845 = vadd.f32 %v1700, %v1817
        %v1846 = vadd.f32 %v1702, %v1818
        %v1847 = vadd.f32 %v1704, %v1819
        %v1848 = vmax.f32 %v1840, 0.0
        %v1849 = vmax.f32 %v1841, 0.0
        %v1850 = vmax.f32 %v1842, 0.0
        %v1851 = vmax.f32 %v1843, 0.0
        %v1852 = vmax.f32 %v1844, 0.0
        %v1853 = vmax.f32 %v1845, 0.0
        %v1854 = vmax.f32 %v1846, 0.0
        %v1855 = vmax.f32 %v1847, 0.0
        %v1856 = vpack.c.bf16 %v1850, %v1848
        %v1857 = vpack.c.bf16 %v1851, %v1849
        %v1858 = vpack.c.bf16 %v1854, %v1852
        %v1859 = vpack.c.bf16 %v1855, %v1853
        %v1860 = vadd.f32 %v1741, %v1812
        %v1861 = vadd.f32 %v1743, %v1813
        %v1862 = vadd.f32 %v1745, %v1814
        %v1863 = vadd.f32 %v1747, %v1815
        %v1864 = vadd.f32 %v1751, %v1816
        %v1865 = vadd.f32 %v1753, %v1817
        %v1866 = vadd.f32 %v1755, %v1818
        %v1867 = vadd.f32 %v1757, %v1819
        %v1868 = vmax.f32 %v1860, 0.0
        %v1869 = vmax.f32 %v1861, 0.0
        %v1870 = vmax.f32 %v1862, 0.0
        %v1871 = vmax.f32 %v1863, 0.0
        %v1872 = vmax.f32 %v1864, 0.0
        %v1873 = vmax.f32 %v1865, 0.0
        %v1874 = vmax.f32 %v1866, 0.0
        %v1875 = vmax.f32 %v1867, 0.0
        %v1876 = vpack.c.bf16 %v1870, %v1868
        %v1877 = vpack.c.bf16 %v1871, %v1869
        %v1878 = vpack.c.bf16 %v1874, %v1872
        %v1879 = vpack.c.bf16 %v1875, %v1873
        %v1880 = vadd.f32 %v1794, %v1812
        %v1881 = vadd.f32 %v1796, %v1813
        %v1882 = vadd.f32 %v1798, %v1814
        %v1883 = vadd.f32 %v1800, %v1815
        %v1884 = vadd.f32 %v1804, %v1816
        %v1885 = vadd.f32 %v1806, %v1817
        %v1886 = vadd.f32 %v1808, %v1818
        %v1887 = vadd.f32 %v1810, %v1819
        %v1888 = vmax.f32 %v1880, 0.0
        %v1889 = vmax.f32 %v1881, 0.0
        %v1890 = vmax.f32 %v1882, 0.0
        %v1891 = vmax.f32 %v1883, 0.0
        %v1892 = vmax.f32 %v1884, 0.0
        %v1893 = vmax.f32 %v1885, 0.0
        %v1894 = vmax.f32 %v1886, 0.0
        %v1895 = vmax.f32 %v1887, 0.0
        %v1896 = vpack.c.bf16 %v1890, %v1888
        %v1897 = vpack.c.bf16 %v1891, %v1889
        %v1898 = vpack.c.bf16 %v1894, %v1892
        %v1899 = vpack.c.bf16 %v1895, %v1893
        %v1900 = vld [vmem:[%s4] sm:$0xf]
        %v1902 = vsel %vm457, %v1900, 0
        %1904 = vmatprep.subr.bf16.mxu0 0
        %1905 = vmatpush1.bf16.msra.mxu0 0
        %1906 = vmatprep.subr.bf16.mxu0 0
        %1907 = vmatpush1.bf16.msra.mxu0 0
        %1908 = vmatprep.subr.bf16.mxu0 0
        %1909 = vmatpush1.bf16.msra.mxu0 0
        %1910 = vmatprep.subr.bf16.mxu0 0
        %1911 = vmatpush1.bf16.msra.mxu0 0
        %1912 = vmatprep.subr.bf16.mxu0 0
        %1913 = vmatpush1.bf16.msra.mxu0 0
        %1914 = vmatprep.subr.bf16.mxu0 0
        %1915 = vmatpush1.bf16.msra.mxu0 0
        %1916 = vmatprep.subr.bf16.mxu0 %v1839
        %1917 = vmatpush1.bf16.msra.mxu0 %v1838
        %1918 = vmatprep.subr.bf16.mxu0 %v1837
        %1919 = vmatpush1.bf16.msra.mxu0 %v1836
        %1920 = vmatprep.subr.bf16.mxu0 0
        %1921 = vmatpush2.bf16.msra.mxu0 0
        %1922 = vmatprep.subr.bf16.mxu0 0
        %1923 = vmatpush2.bf16.msra.mxu0 0
        %1924 = vmatprep.subr.bf16.mxu0 0
        %1925 = vmatpush2.bf16.msra.mxu0 0
        %1926 = vmatprep.subr.bf16.mxu0 0
        %1927 = vmatpush2.bf16.msra.mxu0 0
        %1928 = vmatprep.subr.bf16.mxu0 0
        %1929 = vmatpush2.bf16.msra.mxu0 0
        %1930 = vmatprep.subr.bf16.mxu0 0
        %1931 = vmatpush2.bf16.msra.mxu0 0
        %1932 = vmatprep.subr.bf16.mxu0 0
        %1933 = vmatpush2.bf16.msra.mxu0 0
        %1934 = vmatprep.subr.bf16.mxu0 0
        %1935 = vmatpush2.bf16.msra.mxu0 0
        %1936 = vmatprep.mubr.bf16.mxu0 0
        %1937 = vmatmul.mubr.bf16.gmra.mxu0 %v1902
        %v1938 = vpop.f32.mrf.mxu0
        %v1939 = vadd.f32 0.0, %v1938
        %v1940 = vpop.f32.mrf.mxu0
        %v1941 = vadd.f32 0.0, %v1940
        %v1942 = vpop.f32.mrf.mxu0
        %v1943 = vpop.f32.mrf.mxu0
        %1944 = vdwg.mxu0
        %1945 = vmatprep.subr.bf16.mxu0 0
        %1946 = vmatpush1.bf16.msra.mxu0 0
        %1947 = vmatprep.subr.bf16.mxu0 0
        %1948 = vmatpush1.bf16.msra.mxu0 0
        %1949 = vmatprep.subr.bf16.mxu0 0
        %1950 = vmatpush1.bf16.msra.mxu0 0
        %1951 = vmatprep.subr.bf16.mxu0 0
        %1952 = vmatpush1.bf16.msra.mxu0 0
        %1953 = vmatprep.subr.bf16.mxu0 0
        %1954 = vmatpush1.bf16.msra.mxu0 0
        %1955 = vmatprep.subr.bf16.mxu0 0
        %1956 = vmatpush1.bf16.msra.mxu0 0
        %1957 = vmatprep.subr.bf16.mxu0 %v1859
        %1958 = vmatpush1.bf16.msra.mxu0 %v1858
        %1959 = vmatprep.subr.bf16.mxu0 %v1857
        %1960 = vmatpush1.bf16.msra.mxu0 %v1856
        %1961 = vmatprep.subr.bf16.mxu0 0
        %1962 = vmatpush2.bf16.msra.mxu0 0
        %1963 = vmatprep.subr.bf16.mxu0 0
        %1964 = vmatpush2.bf16.msra.mxu0 0
        %1965 = vmatprep.subr.bf16.mxu0 0
        %1966 = vmatpush2.bf16.msra.mxu0 0
        %1967 = vmatprep.subr.bf16.mxu0 0
        %1968 = vmatpush2.bf16.msra.mxu0 0
        %1969 = vmatprep.subr.bf16.mxu0 0
        %1970 = vmatpush2.bf16.msra.mxu0 0
        %1971 = vmatprep.subr.bf16.mxu0 0
        %1972 = vmatpush2.bf16.msra.mxu0 0
        %1973 = vmatprep.subr.bf16.mxu0 0
        %1974 = vmatpush2.bf16.msra.mxu0 0
        %1975 = vmatprep.subr.bf16.mxu0 0
        %1976 = vmatpush2.bf16.msra.mxu0 0
        %1977 = vmatprep.mubr.bf16.mxu0 0
        %1978 = vmatmul.mubr.bf16.gmra.mxu0 %v1902
        %v1979 = vpop.f32.mrf.mxu0
        %v1980 = vadd.f32 0.0, %v1979
        %v1981 = vpop.f32.mrf.mxu0
        %v1982 = vadd.f32 0.0, %v1981
        %v1983 = vpop.f32.mrf.mxu0
        %v1984 = vpop.f32.mrf.mxu0
        %1985 = vdwg.mxu0
        %1986 = vmatprep.subr.bf16.mxu0 0
        %1987 = vmatpush1.bf16.msra.mxu0 0
        %1988 = vmatprep.subr.bf16.mxu0 0
        %1989 = vmatpush1.bf16.msra.mxu0 0
        %1990 = vmatprep.subr.bf16.mxu0 0
        %1991 = vmatpush1.bf16.msra.mxu0 0
        %1992 = vmatprep.subr.bf16.mxu0 0
        %1993 = vmatpush1.bf16.msra.mxu0 0
        %1994 = vmatprep.subr.bf16.mxu0 0
        %1995 = vmatpush1.bf16.msra.mxu0 0
        %1996 = vmatprep.subr.bf16.mxu0 0
        %1997 = vmatpush1.bf16.msra.mxu0 0
        %1998 = vmatprep.subr.bf16.mxu0 %v1879
        %1999 = vmatpush1.bf16.msra.mxu0 %v1878
        %2000 = vmatprep.subr.bf16.mxu0 %v1877
        %2001 = vmatpush1.bf16.msra.mxu0 %v1876
        %2002 = vmatprep.subr.bf16.mxu0 0
        %2003 = vmatpush2.bf16.msra.mxu0 0
        %2004 = vmatprep.subr.bf16.mxu0 0
        %2005 = vmatpush2.bf16.msra.mxu0 0
        %2006 = vmatprep.subr.bf16.mxu0 0
        %2007 = vmatpush2.bf16.msra.mxu0 0
        %2008 = vmatprep.subr.bf16.mxu0 0
        %2009 = vmatpush2.bf16.msra.mxu0 0
        %2010 = vmatprep.subr.bf16.mxu0 0
        %2011 = vmatpush2.bf16.msra.mxu0 0
        %2012 = vmatprep.subr.bf16.mxu0 0
        %2013 = vmatpush2.bf16.msra.mxu0 0
        %2014 = vmatprep.subr.bf16.mxu0 0
        %2015 = vmatpush2.bf16.msra.mxu0 0
        %2016 = vmatprep.subr.bf16.mxu0 0
        %2017 = vmatpush2.bf16.msra.mxu0 0
        %2018 = vmatprep.mubr.bf16.mxu0 0
        %2019 = vmatmul.mubr.bf16.gmra.mxu0 %v1902
        %v2020 = vpop.f32.mrf.mxu0
        %v2021 = vadd.f32 0.0, %v2020
        %v2022 = vpop.f32.mrf.mxu0
        %v2023 = vadd.f32 0.0, %v2022
        %v2024 = vpop.f32.mrf.mxu0
        %v2025 = vpop.f32.mrf.mxu0
        %2026 = vdwg.mxu0
        %2027 = vmatprep.subr.bf16.mxu0 0
        %2028 = vmatpush1.bf16.msra.mxu0 0
        %2029 = vmatprep.subr.bf16.mxu0 0
        %2030 = vmatpush1.bf16.msra.mxu0 0
        %2031 = vmatprep.subr.bf16.mxu0 0
        %2032 = vmatpush1.bf16.msra.mxu0 0
        %2033 = vmatprep.subr.bf16.mxu0 0
        %2034 = vmatpush1.bf16.msra.mxu0 0
        %2035 = vmatprep.subr.bf16.mxu0 0
        %2036 = vmatpush1.bf16.msra.mxu0 0
        %2037 = vmatprep.subr.bf16.mxu0 0
        %2038 = vmatpush1.bf16.msra.mxu0 0
        %2039 = vmatprep.subr.bf16.mxu0 %v1899
        %2040 = vmatpush1.bf16.msra.mxu0 %v1898
        %2041 = vmatprep.subr.bf16.mxu0 %v1897
        %2042 = vmatpush1.bf16.msra.mxu0 %v1896
        %2043 = vmatprep.subr.bf16.mxu0 0
        %2044 = vmatpush2.bf16.msra.mxu0 0
        %2045 = vmatprep.subr.bf16.mxu0 0
        %2046 = vmatpush2.bf16.msra.mxu0 0
        %2047 = vmatprep.subr.bf16.mxu0 0
        %2048 = vmatpush2.bf16.msra.mxu0 0
        %2049 = vmatprep.subr.bf16.mxu0 0
        %2050 = vmatpush2.bf16.msra.mxu0 0
        %2051 = vmatprep.subr.bf16.mxu0 0
        %2052 = vmatpush2.bf16.msra.mxu0 0
        %2053 = vmatprep.subr.bf16.mxu0 0
        %2054 = vmatpush2.bf16.msra.mxu0 0
        %2055 = vmatprep.subr.bf16.mxu0 0
        %2056 = vmatpush2.bf16.msra.mxu0 0
        %2057 = vmatprep.subr.bf16.mxu0 0
        %2058 = vmatpush2.bf16.msra.mxu0 0
        %2059 = vmatprep.mubr.bf16.mxu0 0
        %2060 = vmatmul.mubr.bf16.gmra.mxu0 %v1902
        %v2061 = vpop.f32.mrf.mxu0
        %v2062 = vadd.f32 0.0, %v2061
        %v2063 = vpop.f32.mrf.mxu0
        %v2064 = vadd.f32 0.0, %v2063
        %v2065 = vpop.f32.mrf.mxu0
        %v2066 = vpop.f32.mrf.mxu0
        %2067 = vdwg.mxu0
        %v2068 = vld [vmem:[%s5] sm:$0xff]
        %v2069 = vld [vmem:[%s274] sm:$0xff]
        %v2070 = vld [vmem:[%s274 + $0x8] sm:$0xff]
        %v2071 = vadd.f32 %v2069, %v1939
        %v2072 = vadd.f32 %v2070, %v1941
        %2074 = vset.pattern.permute.xlu0 0
        %2075 = vperm.xlu0 %2074, %v2068
        %v2076 = vpop.permute.xlu0 %2075
        %v2078 = vadd.f32 %v2071, %v2076
        %v2079 = vadd.f32 %v2072, %v2076
        %v2080 = vmax.f32 %v2078, 0.0
        %v2081 = vmax.f32 %v2079, 0.0
        %2082 = vst [vmem:[%s314] sm:$0xff] %v2080
        %2083 = vst [vmem:[%s314 + $0x8] sm:$0xff] %v2081
        %v2084 = vld [vmem:[%s691] sm:$0xff]
        %v2085 = vld [vmem:[%s691 + $0x8] sm:$0xff]
        %v2086 = vadd.f32 %v2084, %v1980
        %v2087 = vadd.f32 %v2085, %v1982
        %v2088 = vadd.f32 %v2086, %v2076
        %v2089 = vadd.f32 %v2087, %v2076
        %v2090 = vmax.f32 %v2088, 0.0
        %v2091 = vmax.f32 %v2089, 0.0
        %s2092 = scalar_lea.vmem %s314, 16 [#allocation12]
        %2093 = vst [vmem:[%s2092] sm:$0xff] %v2090
        %2094 = vst [vmem:[%s2092 + $0x8] sm:$0xff] %v2091
        %v2095 = vld [vmem:[%s907] sm:$0xff]
        %v2096 = vld [vmem:[%s907 + $0x8] sm:$0xff]
        %v2097 = vadd.f32 %v2095, %v2021
        %v2098 = vadd.f32 %v2096, %v2023
        %v2099 = vadd.f32 %v2097, %v2076
        %v2100 = vadd.f32 %v2098, %v2076
        %v2101 = vmax.f32 %v2099, 0.0
        %v2102 = vmax.f32 %v2100, 0.0
        %s2103 = scalar_lea.vmem %s314, 32 [#allocation12]
        %2104 = vst [vmem:[%s2103] sm:$0xff] %v2101
        %2105 = vst [vmem:[%s2103 + $0x8] sm:$0xff] %v2102
        %v2106 = vld [vmem:[%s1123] sm:$0xff]
        %v2107 = vld [vmem:[%s1123 + $0x8] sm:$0xff]
        %v2108 = vadd.f32 %v2106, %v2062
        %v2109 = vadd.f32 %v2107, %v2064
        %v2110 = vadd.f32 %v2108, %v2076
        %v2111 = vadd.f32 %v2109, %v2076
        %v2112 = vmax.f32 %v2110, 0.0
        %v2113 = vmax.f32 %v2111, 0.0
        %s2114 = scalar_lea.vmem %s314, 48 [#allocation12]
        %2115 = vst [vmem:[%s2114] sm:$0xff] %v2112
        %2116 = vst [vmem:[%s2114 + $0x8] sm:$0xff] %v2113
        %s2117 = sand.u32 %s164, 1
        %s2118 = scalar_lea.sflag [#allocation6], %s2117
        %s2119 = sand.u32 %s164, 1
        %s2120 = smul.addr %s2119, 64
        %s2121 = scalar_lea.vmem [#allocation12], %s2120
        // Predicated region
        $region61: #{tpu_custom_call.1} parent=43 // pred_check
          %p2122 = pneg %p174
        $region62: #{tpu_custom_call.1} parent=43 // pred_check_branch
          %2124 = sbr.rel (%p2122) target = $region64
        $region63: #{tpu_custom_call.1} parent=43 // pred_region
          %s2125 = smul.u32 4, %s25
          %s2127 = ssub.s32 1024, 1024
          %2128 = vsyncadd %s2118, %s2127
          %s2129 = smul.addr %s2125, 2
          %s2130 = smul.addr %s2129, 128
          %s2131 = scalar_lea.hbm %s6, %s2130
          %s2132 = sshll.u32 %s2121, 4
          %s2133 = int_to_ptr.vmem [resolvable:$true] %s2132
          %2138 = dma.vmem_to_hbm [thread:$0]  %s2133, 1024, %s2131, %s2118, 256, 256, 16
        $region64: #{tpu_custom_call.1} parent=43 // pred_fallthru
          _
      $region44: #{tpu_custom_call.1} parent=5 // pred_fallthru
        _
      %p2139 = scmp.le.s32.totalorder 2, %s20
      // Predicated region
      $region65: #{tpu_custom_call.1} parent=5 // pred_check
        %p2140 = pneg %p2139
      $region66: #{tpu_custom_call.1} parent=5 // pred_check_branch
        %2142 = sbr.rel (%p2140) target = $region68
      $region67: #{tpu_custom_call.1} parent=5 // pred_region
        %s2143 = ssub.s32 %s20, 2
        // Predicated region
        $region69: #{tpu_custom_call.1} parent=67 // pred_check
          %p2144 = pneg %p180
        $region70: #{tpu_custom_call.1} parent=67 // pred_check_branch
          %2146 = sbr.rel (%p2144) target = $region72
        $region71: #{tpu_custom_call.1} parent=67 // pred_region
          %s2147 = sand.u32 %s165, 1
          %s2148 = scalar_lea.sflag [#allocation6], %s2147
          %s2149 = sand.u32 %s165, 1
          %s2150 = smul.addr %s2149, 64
          %s2151 = scalar_lea.vmem [#allocation12], %s2150
          %2152 = dma.done %s2148, 1024
        $region72: #{tpu_custom_call.1} parent=67 // pred_fallthru
          _
      $region68: #{tpu_custom_call.1} parent=5 // pred_fallthru
        _
    $region6: #{tpu_custom_call.1} parent=1 // loop_footer
      %s24 = sadd.s32 1, %s20
    $region7: #{tpu_custom_call.1} parent=1 // loop_footer_branch
      %19 = sbr.rel target = $region3
    $region8: #{tpu_custom_call.1} parent=1 // loop_exit
      _
    %2153 = vsyncpa [#allocation5], 1
    %s2154 = scalar_lea.sflag [#allocation5], 1
    %2155 = vsyncpa %s2154, 1
    %2156 = vsyncpa [#allocation8], 1
    %2157 = vsyncpa [#allocation11], 1
    %2158 = vsyncpa [#allocation6], 1
    %s2159 = scalar_lea.sflag [#allocation6], 1
    %2160 = vsyncpa %s2159, 1

</llo_original>
